<compile_context>
chip_gen: v7x
topology: tpu7x:2x2x1
jax: 0.10.0
libtpu: 0.0.40
codegen_flags: <defaults>
</compile_context>

<pallas_src>
import jax
import jax.numpy as jnp
from jax import lax
from jax.experimental import pallas as pl
from jax.experimental.pallas import tpu as pltpu

EMB_LENGTH = 11            # E (real feature width)
LANES = 128                # padded feature width (one vreg lane span)
GATES = 3                  # GRU gates: r, z, n (PyTorch order)
CHUNK = 8                  # recurrence steps between (8,128) output flushes
NSEM = 8                   # fixed round-robin DMA-semaphore pool (large-V path)
VMEM_TABLE_BYTES = 4 << 20  # below this padded-table size, gather in VMEM


# ---------------------------------------------------------------------------
# Shared recurrence: h carried in vregs, 8 unrolled steps per outer iteration
# ---------------------------------------------------------------------------
def _gru_recurrence(gi_scr, h0_ref, w_hh_ref, bhh_n_ref, out_ref):
    T, EP = out_ref.shape
    bhh_n = bhh_n_ref[...]                     # (1, EP) constant, hoisted once
    n_chunks = T // CHUNK                      # T is padded to a multiple of CHUNK

    def chunk_body(c, h):
        base = pl.multiple_of(c * CHUNK, CHUNK)
        gi_chunk = gi_scr[pl.ds(base, CHUNK), :]          # one (8, 3*EP) load per chunk
        rows = []
        for j in range(CHUNK):                            # unrolled, scheduler-visible
            gi = gi_chunk[j:j + 1, :]                     # static vreg slice
            gh = jnp.dot(h, w_hh_ref[...],
                         preferred_element_type=jnp.float32)   # (1, 3*EP)
            r = jax.nn.sigmoid(gi[:, 0:EP] + gh[:, 0:EP])
            z = jax.nn.sigmoid(gi[:, EP:2 * EP] + gh[:, EP:2 * EP])
            n = jnp.tanh(gi[:, 2 * EP:3 * EP]
                         + r * (gh[:, 2 * EP:3 * EP] + bhh_n))
            h = n + z * (h - n)                           # == (1-z)*n + z*h
            rows.append(h)
        out_ref[pl.ds(base, CHUNK), :] = jnp.concatenate(rows, axis=0)
        return h

    lax.fori_loop(0, n_chunks, chunk_body, h0_ref[...])


# ---------------------------------------------------------------------------
# Kernel A: small vocabulary — embedding table resident in VMEM, one-hot gather
# ---------------------------------------------------------------------------
def encoder_kernel_vmem(tok_ref,       # VMEM (T, 1) int32 token ids
                        emb_ref,       # VMEM (Vp, 128) lane-padded embedding table
                        h0_ref,        # VMEM (1, 128) initial hidden
                        w_ih_ref,      # VMEM (128, 384) W_ih^T (gate-slotted)
                        w_hh_ref,      # VMEM (128, 384) W_hh^T (gate-slotted)
                        bias_gi_ref,   # VMEM (1, 384) folded r/z biases + b_in
                        bhh_n_ref,     # VMEM (1, 128) b_hn
                        out_ref,       # VMEM (T, 128) per-step hidden / output
                        gi_scr):       # VMEM (T, 384) precomputed input projection
    T = out_ref.shape[0]
    Vp = emb_ref.shape[0]
    # One-hot gather on the MXU: (T, Vp) @ (Vp, 128).
    onehot = (tok_ref[...] ==
              lax.broadcasted_iota(jnp.int32, (T, Vp), 1)).astype(jnp.float32)
    x = jnp.dot(onehot, emb_ref[...], preferred_element_type=jnp.float32)
    # Batched non-recurrent input projection for all timesteps.
    gi_scr[...] = (jnp.dot(x, w_ih_ref[...], preferred_element_type=jnp.float32)
                   + bias_gi_ref[...])
    _gru_recurrence(gi_scr, h0_ref, w_hh_ref, bhh_n_ref, out_ref)


# ---------------------------------------------------------------------------
# Kernel B: large vocabulary — table stays in HBM, row gather via DMA with a
# fixed round-robin semaphore pool (max NSEM outstanding DMAs).
# ---------------------------------------------------------------------------
def encoder_kernel_dma(tok_ref,        # SMEM (T,) int32 token ids (scalar prefetch)
                       emb_hbm,        # HBM  (V, 128) embedding table
                       h0_ref, w_ih_ref, w_hh_ref, bias_gi_ref, bhh_n_ref,
                       out_ref,        # VMEM (T, 128)
                       x_scr,          # VMEM (T, 128) gathered embeddings
                       gi_scr,         # VMEM (T, 384)
                       sem):           # DMA sems (NSEM,)
    T = out_ref.shape[0]

    def row_copy(t, slot):
        return pltpu.make_async_copy(
            emb_hbm.at[pl.ds(tok_ref[t], 1), :],
            x_scr.at[pl.ds(t, 1), :],
            sem.at[slot])

    @pl.loop(0, T)
    def _issue(t):
        slot = lax.rem(t, NSEM)

        @pl.when(t >= NSEM)
        def _():
            row_copy(t - NSEM, slot).wait()   # free this slot before reuse

        row_copy(t, slot).start()

    @pl.loop(max(0, T - NSEM), T)
    def _drain(t):
        row_copy(t, lax.rem(t, NSEM)).wait()

    gi_scr[...] = (jnp.dot(x_scr[...], w_ih_ref[...],
                           preferred_element_type=jnp.float32)
                   + bias_gi_ref[...])
    _gru_recurrence(gi_scr, h0_ref, w_hh_ref, bhh_n_ref, out_ref)


# ---------------------------------------------------------------------------
# Parameter prep (one-time layout padding; pure glue)
# ---------------------------------------------------------------------------
def _pad_params(params):
    E, EP = EMB_LENGTH, LANES
    emb = params["embedding"].astype(jnp.float32)                 # (V, E)
    V = emb.shape[0]
    emb_p = jnp.zeros((V, EP), jnp.float32).at[:, :E].set(emb)

    w_ih_t = params["w_ih"].astype(jnp.float32).T                 # (E, 3E)
    w_hh_t = params["w_hh"].astype(jnp.float32).T                 # (E, 3E)
    w_ih_p = jnp.zeros((EP, GATES * EP), jnp.float32)
    w_hh_p = jnp.zeros((EP, GATES * EP), jnp.float32)
    for g in range(GATES):                                        # one 128-lane slot per gate
        w_ih_p = w_ih_p.at[:E, g * EP:g * EP + E].set(w_ih_t[:, g * E:(g + 1) * E])
        w_hh_p = w_hh_p.at[:E, g * EP:g * EP + E].set(w_hh_t[:, g * E:(g + 1) * E])

    b_ih = params["b_ih"].astype(jnp.float32)
    b_hh = params["b_hh"].astype(jnp.float32)
    bias_gi = jnp.zeros((1, GATES * EP), jnp.float32)
    bias_gi = bias_gi.at[0, 0:E].set(b_ih[0:E] + b_hh[0:E])                 # r: fold both
    bias_gi = bias_gi.at[0, EP:EP + E].set(b_ih[E:2 * E] + b_hh[E:2 * E])   # z: fold both
    bias_gi = bias_gi.at[0, 2 * EP:2 * EP + E].set(b_ih[2 * E:3 * E])       # n: only b_in
    bhh_n = jnp.zeros((1, EP), jnp.float32).at[0, :E].set(b_hh[2 * E:3 * E])
    return emb_p, w_ih_p, w_hh_p, bias_gi, bhh_n


# ---------------------------------------------------------------------------
# Wrappers
# ---------------------------------------------------------------------------
def encoder_rnn_sequence(tokens, hidden, params, *, force_dma_gather=False):
    """Run EncoderRNN over a whole token sequence with one fused Pallas kernel.

    Equivalent to calling EncoderRNN.forward once per token and threading the
    hidden state through.  tokens: (T,) int32, hidden: (1,1,E).
    Returns (outputs (T,1,E), final_hidden (1,1,E)).
    """
    E, EP = EMB_LENGTH, LANES
    tokens = jnp.asarray(tokens, jnp.int32).reshape(-1)
    T = int(tokens.shape[0])
    T_pad = max(CHUNK, ((T + CHUNK - 1) // CHUNK) * CHUNK)
    if T_pad != T:
        # pad with token 0 (valid index); padded steps are computed and discarded
        tokens = jnp.concatenate([tokens, jnp.zeros((T_pad - T,), jnp.int32)])

    emb_p, w_ih_p, w_hh_p, bias_gi, bhh_n = _pad_params(params)
    V = emb_p.shape[0]
    h0 = jnp.zeros((1, EP), jnp.float32).at[0, :E].set(
        hidden.reshape(E).astype(jnp.float32))

    cparams = pltpu.CompilerParams(
        dimension_semantics=("arbitrary",),
        vmem_limit_bytes=32 * 1024 * 1024)

    use_vmem_table = (not force_dma_gather) and (V * EP * 4 <= VMEM_TABLE_BYTES)

    if use_vmem_table:
        Vp = max(LANES, ((V + LANES - 1) // LANES) * LANES)
        emb_vp = jnp.zeros((Vp, EP), jnp.float32).at[:V, :].set(emb_p)
        tok2d = tokens.reshape(T_pad, 1)
        out = pl.pallas_call(
            encoder_kernel_vmem,
            out_shape=jax.ShapeDtypeStruct((T_pad, EP), jnp.float32),
            grid_spec=pltpu.PrefetchScalarGridSpec(
                num_scalar_prefetch=0,
                grid=(1,),
                in_specs=[
                    pl.BlockSpec((T_pad, 1), lambda i: (0, 0)),           # token ids
                    pl.BlockSpec((Vp, EP), lambda i: (0, 0)),             # embedding table
                    pl.BlockSpec((1, EP), lambda i: (0, 0)),              # h0
                    pl.BlockSpec((EP, GATES * EP), lambda i: (0, 0)),     # W_ih^T
                    pl.BlockSpec((EP, GATES * EP), lambda i: (0, 0)),     # W_hh^T
                    pl.BlockSpec((1, GATES * EP), lambda i: (0, 0)),      # folded bias
                    pl.BlockSpec((1, EP), lambda i: (0, 0)),              # b_hn
                ],
                out_specs=pl.BlockSpec((T_pad, EP), lambda i: (0, 0)),
                scratch_shapes=[
                    pltpu.VMEM((T_pad, GATES * EP), jnp.float32),         # GI
                ],
            ),
            compiler_params=cparams,
        )(tok2d, emb_vp, h0, w_ih_p, w_hh_p, bias_gi, bhh_n)
    else:
        out = pl.pallas_call(
            encoder_kernel_dma,
            out_shape=jax.ShapeDtypeStruct((T_pad, EP), jnp.float32),
            grid_spec=pltpu.PrefetchScalarGridSpec(
                num_scalar_prefetch=1,
                grid=(1,),
                in_specs=[
                    pl.BlockSpec(memory_space=pl.ANY),                        # table stays in HBM
                    pl.BlockSpec((1, EP), lambda i, tok: (0, 0)),             # h0
                    pl.BlockSpec((EP, GATES * EP), lambda i, tok: (0, 0)),    # W_ih^T
                    pl.BlockSpec((EP, GATES * EP), lambda i, tok: (0, 0)),    # W_hh^T
                    pl.BlockSpec((1, GATES * EP), lambda i, tok: (0, 0)),     # folded bias
                    pl.BlockSpec((1, EP), lambda i, tok: (0, 0)),             # b_hn
                ],
                out_specs=pl.BlockSpec((T_pad, EP), lambda i, tok: (0, 0)),
                scratch_shapes=[
                    pltpu.VMEM((T_pad, EP), jnp.float32),            # gathered embeddings
                    pltpu.VMEM((T_pad, GATES * EP), jnp.float32),    # GI
                    pltpu.SemaphoreType.DMA((NSEM,)),                # fixed sem pool
                ],
            ),
            compiler_params=cparams,
        )(tokens, emb_p, h0, w_ih_p, w_hh_p, bias_gi, bhh_n)

    outputs = out[:T, :E].reshape(T, 1, E)
    final_hidden = out[T - 1, :E].reshape(1, 1, E)
    return outputs, final_hidden


def encoder_rnn_forward(token_idx, hidden, params):
    """Single-step API matching EncoderRNN.forward(input, hidden)."""
    outputs, h_new = encoder_rnn_sequence(
        jnp.asarray(token_idx, jnp.int32).reshape(1), hidden, params)
    return outputs.reshape(1, 1, EMB_LENGTH), h_new


# ---------------------------------------------------------------------------
# Parameter init + pure-JAX references
# ---------------------------------------------------------------------------
def init_params(key, input_size):
    E = EMB_LENGTH
    k_emb, k_wih, k_whh, k_bih, k_bhh = jax.random.split(key, 5)
    bound = 1.0 / jnp.sqrt(E)
    return {
        "embedding": jax.random.normal(k_emb, (input_size, E), jnp.float32),
        "w_ih": jax.random.uniform(k_wih, (3 * E, E), jnp.float32, -bound, bound),
        "w_hh": jax.random.uniform(k_whh, (3 * E, E), jnp.float32, -bound, bound),
        "b_ih": jax.random.uniform(k_bih, (3 * E,), jnp.float32, -bound, bound),
        "b_hh": jax.random.uniform(k_bhh, (3 * E,), jnp.float32, -bound, bound),
    }


def _ref_gru_step(x, h, params):
    E = EMB_LENGTH
    gi = params["w_ih"] @ x + params["b_ih"]
    gh = params["w_hh"] @ h + params["b_hh"]
    r = jax.nn.sigmoid(gi[:E] + gh[:E])
    z = jax.nn.sigmoid(gi[E:2 * E] + gh[E:2 * E])
    n = jnp.tanh(gi[2 * E:] + r * gh[2 * E:])
    return (1.0 - z) * n + z * h


def ref_forward(token_idx, hidden, params):
    E = EMB_LENGTH
    x = params["embedding"][token_idx]
    h = _ref_gru_step(x, hidden.reshape(E), params)
    return h.reshape(1, 1, E), h.reshape(1, 1, E)


def ref_sequence(tokens, hidden, params):
    E = EMB_LENGTH
    h = hidden.reshape(E)
    outs = []
    for t in range(tokens.shape[0]):
        x = params["embedding"][tokens[t]]
        h = _ref_gru_step(x, h, params)
        outs.append(h)
    return jnp.stack(outs).reshape(-1, 1, E), h.reshape(1, 1, E)


# ---------------------------------------------------------------------------
if __name__ == "__main__":
    input_size = 16
    T = 8
    key = jax.random.PRNGKey(0)
    k_params, k_tok = jax.random.split(key)

    params = init_params(k_params, input_size)
    tokens = jax.random.randint(k_tok, (T,), 0, input_size, dtype=jnp.int32)
    hidden0 = jnp.zeros((1, 1, EMB_LENGTH), jnp.float32)    # initHidden()

    outs_ref, h_ref_final = ref_sequence(tokens, hidden0, params)

    # Fused sequence run (one pallas_call, VMEM one-hot gather path).
    outs, h_final = encoder_rnn_sequence(tokens, hidden0, params)
    outs = jax.block_until_ready(outs)
    h_final = jax.block_until_ready(h_final)
    assert outs.shape == (T, 1, EMB_LENGTH)
    assert h_final.shape == (1, 1, EMB_LENGTH)
    assert jnp.allclose(outs, outs_ref, atol=3e-5, rtol=1e-4)
    assert jnp.allclose(h_final, h_ref_final, atol=3e-5, rtol=1e-4)

    # Large-vocab code path (HBM DMA gather with fixed semaphore pool).
    outs_dma, h_dma = encoder_rnn_sequence(tokens, hidden0, params,
                                           force_dma_gather=True)
    outs_dma = jax.block_until_ready(outs_dma)
    assert jnp.allclose(outs_dma, outs_ref, atol=3e-5, rtol=1e-4)
    assert jnp.allclose(h_dma, h_ref_final, atol=3e-5, rtol=1e-4)

    # Single-step API, matching EncoderRNN.forward(input, hidden).
    out1, h1 = encoder_rnn_forward(int(tokens[0]), hidden0, params)
    out1 = jax.block_until_ready(out1)
    out1_ref, h1_ref = ref_forward(int(tokens[0]), hidden0, params)
    assert jnp.allclose(out1, out1_ref, atol=1e-5, rtol=1e-4)
    assert jnp.allclose(h1, h1_ref, atol=1e-5, rtol=1e-4)

    print("KERNEL_OK")
</pallas_src>

<mosaic_0001>
module attributes {stable_mosaic.version = 11 : i64} {
  func.func @encoder_kernel_vmem(%arg0: i32, %arg1: memref<8x1xi32, #tpu.memory_space<vmem>>, %arg2: memref<128x128xf32, #tpu.memory_space<vmem>>, %arg3: memref<1x128xf32, #tpu.memory_space<vmem>>, %arg4: memref<128x384xf32, #tpu.memory_space<vmem>>, %arg5: memref<128x384xf32, #tpu.memory_space<vmem>>, %arg6: memref<1x384xf32, #tpu.memory_space<vmem>>, %arg7: memref<1x128xf32, #tpu.memory_space<vmem>>, %arg8: memref<8x128xf32, #tpu.memory_space<vmem>>, %arg9: memref<8x384xf32, #tpu.memory_space<vmem>>) attributes {dimension_semantics = [#tpu.dimension_semantics<arbitrary>], iteration_bounds = array<i64: 1>, scalar_prefetch = 0 : i64, scratch_operands = 1 : i64, tpu.core_type = #tpu.core_type<tc>, window_params = [{pipeline_mode = #tpu.pipeline_mode<synchronous>, transform_indices = @transform_0, window_bounds = array<i64: 8, 1>}, {pipeline_mode = #tpu.pipeline_mode<synchronous>, transform_indices = @transform_1, window_bounds = array<i64: 128, 128>}, {pipeline_mode = #tpu.pipeline_mode<synchronous>, transform_indices = @transform_2, window_bounds = array<i64: 1, 128>}, {pipeline_mode = #tpu.pipeline_mode<synchronous>, transform_indices = @transform_3, window_bounds = array<i64: 128, 384>}, {pipeline_mode = #tpu.pipeline_mode<synchronous>, transform_indices = @transform_4, window_bounds = array<i64: 128, 384>}, {pipeline_mode = #tpu.pipeline_mode<synchronous>, transform_indices = @transform_5, window_bounds = array<i64: 1, 384>}, {pipeline_mode = #tpu.pipeline_mode<synchronous>, transform_indices = @transform_6, window_bounds = array<i64: 1, 128>}, {pipeline_mode = #tpu.pipeline_mode<synchronous>, transform_indices = @transform_7, window_bounds = array<i64: 8, 128>}]} {
    %c0 = arith.constant 0 : index
    %c0_0 = arith.constant 0 : index
    %0 = vector.load %arg1[%c0, %c0_0] : memref<8x1xi32, #tpu.memory_space<vmem>>, vector<8x1xi32>
    %1 = tpu.iota {dimensions = array<i32: 1>} : vector<8x128xi32>
    %2 = vector.broadcast %0 : vector<8x1xi32> to vector<8x128xi32>
    %3 = arith.cmpi eq, %2, %1 : vector<8x128xi32>
    %4 = arith.extui %3 : vector<8x128xi1> to vector<8x128xi32>
    %5 = arith.sitofp %4 : vector<8x128xi32> to vector<8x128xf32>
    %c0_1 = arith.constant 0 : index
    %c0_2 = arith.constant 0 : index
    %6 = vector.load %arg2[%c0_1, %c0_2] : memref<128x128xf32, #tpu.memory_space<vmem>>, vector<128x128xf32>
    %cst = arith.constant dense<0.000000e+00> : vector<8x128xf32>
    %7 = tpu.matmul %5, %6, %cst {dimension_numbers = #tpu.dot_dimension_numbers<[1], [0], [0], [1], [0, 0, 1, 1], [], []>} : vector<8x128xf32>, vector<128x128xf32>, vector<8x128xf32> -> vector<8x128xf32>
    %c0_3 = arith.constant 0 : index
    %c0_4 = arith.constant 0 : index
    %8 = vector.load %arg4[%c0_3, %c0_4] : memref<128x384xf32, #tpu.memory_space<vmem>>, vector<128x384xf32>
    %cst_5 = arith.constant dense<0.000000e+00> : vector<8x384xf32>
    %9 = tpu.matmul %7, %8, %cst_5 {dimension_numbers = #tpu.dot_dimension_numbers<[1], [0], [0], [1], [0, 0, 1, 1], [], []>} : vector<8x128xf32>, vector<128x384xf32>, vector<8x384xf32> -> vector<8x384xf32>
    %c0_6 = arith.constant 0 : index
    %c0_7 = arith.constant 0 : index
    %10 = vector.load %arg6[%c0_6, %c0_7] : memref<1x384xf32, #tpu.memory_space<vmem>>, vector<1x384xf32>
    %11 = vector.broadcast %10 : vector<1x384xf32> to vector<8x384xf32>
    %12 = arith.addf %9, %11 : vector<8x384xf32>
    %c0_8 = arith.constant 0 : index
    %c0_9 = arith.constant 0 : index
    %13 = vector.load %arg9[%c0_8, %c0_9] : memref<8x384xf32, #tpu.memory_space<vmem>>, vector<8x384xf32>
    tpu.vector_store %arg9[%c0_8, %c0_9], %12 {strides = array<i32>} : memref<8x384xf32, #tpu.memory_space<vmem>>, vector<8x384xf32>,
    %c0_10 = arith.constant 0 : index
    %c0_11 = arith.constant 0 : index
    %14 = vector.load %arg7[%c0_10, %c0_11] : memref<1x128xf32, #tpu.memory_space<vmem>>, vector<1x128xf32>
    %c0_12 = arith.constant 0 : index
    %c0_13 = arith.constant 0 : index
    %15 = vector.load %arg3[%c0_12, %c0_13] : memref<1x128xf32, #tpu.memory_space<vmem>>, vector<1x128xf32>
    %c0_i32 = arith.constant 0 : i32
    %c8_i32 = arith.constant 8 : i32
    %16 = arith.muli %c0_i32, %c8_i32 : i32
    %17 = tpu.assume_multiple %16, 8 : i32
    %18 = arith.index_cast %17 : i32 to index
    %c0_14 = arith.constant 0 : index
    %19 = vector.load %arg9[%18, %c0_14] : memref<8x384xf32, #tpu.memory_space<vmem>>, vector<8x384xf32>
    %20 = vector.extract_strided_slice %19 {offsets = [0, 0], sizes = [1, 384], strides = [1, 1]} : vector<8x384xf32> to vector<1x384xf32>
    %c0_15 = arith.constant 0 : index
    %c0_16 = arith.constant 0 : index
    %21 = vector.load %arg5[%c0_15, %c0_16] : memref<128x384xf32, #tpu.memory_space<vmem>>, vector<128x384xf32>
    %cst_17 = arith.constant dense<0.000000e+00> : vector<1x384xf32>
    %22 = tpu.matmul %15, %21, %cst_17 {dimension_numbers = #tpu.dot_dimension_numbers<[1], [0], [0], [1], [0, 0, 1, 1], [], []>} : vector<1x128xf32>, vector<128x384xf32>, vector<1x384xf32> -> vector<1x384xf32>
    %23 = vector.extract_strided_slice %20 {offsets = [0, 0], sizes = [1, 128], strides = [1, 1]} : vector<1x384xf32> to vector<1x128xf32>
    %24 = vector.extract_strided_slice %22 {offsets = [0, 0], sizes = [1, 128], strides = [1, 1]} : vector<1x384xf32> to vector<1x128xf32>
    %25 = arith.addf %23, %24 : vector<1x128xf32>
    %26 = arith.negf %25 : vector<1x128xf32>
    %27 = math.exp %26 : vector<1x128xf32>
    %cst_18 = arith.constant 1.000000e+00 : f32
    %28 = vector.broadcast %cst_18 : f32 to vector<1x128xf32>
    %29 = arith.addf %28, %27 : vector<1x128xf32>
    %30 = arith.divf %28, %29 : vector<1x128xf32>
    %31 = vector.extract_strided_slice %20 {offsets = [0, 128], sizes = [1, 128], strides = [1, 1]} : vector<1x384xf32> to vector<1x128xf32>
    %32 = vector.extract_strided_slice %22 {offsets = [0, 128], sizes = [1, 128], strides = [1, 1]} : vector<1x384xf32> to vector<1x128xf32>
    %33 = arith.addf %31, %32 : vector<1x128xf32>
    %34 = arith.negf %33 : vector<1x128xf32>
    %35 = math.exp %34 : vector<1x128xf32>
    %cst_19 = arith.constant 1.000000e+00 : f32
    %36 = vector.broadcast %cst_19 : f32 to vector<1x128xf32>
    %37 = arith.addf %36, %35 : vector<1x128xf32>
    %38 = arith.divf %36, %37 : vector<1x128xf32>
    %39 = vector.extract_strided_slice %20 {offsets = [0, 256], sizes = [1, 128], strides = [1, 1]} : vector<1x384xf32> to vector<1x128xf32>
    %40 = vector.extract_strided_slice %22 {offsets = [0, 256], sizes = [1, 128], strides = [1, 1]} : vector<1x384xf32> to vector<1x128xf32>
    %41 = arith.addf %40, %14 : vector<1x128xf32>
    %42 = arith.mulf %30, %41 : vector<1x128xf32>
    %43 = arith.addf %39, %42 : vector<1x128xf32>
    %44 = math.tanh %43 : vector<1x128xf32>
    %45 = arith.subf %15, %44 : vector<1x128xf32>
    %46 = arith.mulf %38, %45 : vector<1x128xf32>
    %47 = arith.addf %44, %46 : vector<1x128xf32>
    %48 = vector.extract_strided_slice %19 {offsets = [1, 0], sizes = [1, 384], strides = [1, 1]} : vector<8x384xf32> to vector<1x384xf32>
    %c0_20 = arith.constant 0 : index
    %c0_21 = arith.constant 0 : index
    %49 = vector.load %arg5[%c0_20, %c0_21] : memref<128x384xf32, #tpu.memory_space<vmem>>, vector<128x384xf32>
    %cst_22 = arith.constant dense<0.000000e+00> : vector<1x384xf32>
    %50 = tpu.matmul %47, %49, %cst_22 {dimension_numbers = #tpu.dot_dimension_numbers<[1], [0], [0], [1], [0, 0, 1, 1], [], []>} : vector<1x128xf32>, vector<128x384xf32>, vector<1x384xf32> -> vector<1x384xf32>
    %51 = vector.extract_strided_slice %48 {offsets = [0, 0], sizes = [1, 128], strides = [1, 1]} : vector<1x384xf32> to vector<1x128xf32>
    %52 = vector.extract_strided_slice %50 {offsets = [0, 0], sizes = [1, 128], strides = [1, 1]} : vector<1x384xf32> to vector<1x128xf32>
    %53 = arith.addf %51, %52 : vector<1x128xf32>
    %54 = arith.negf %53 : vector<1x128xf32>
    %55 = math.exp %54 : vector<1x128xf32>
    %cst_23 = arith.constant 1.000000e+00 : f32
    %56 = vector.broadcast %cst_23 : f32 to vector<1x128xf32>
    %57 = arith.addf %56, %55 : vector<1x128xf32>
    %58 = arith.divf %56, %57 : vector<1x128xf32>
    %59 = vector.extract_strided_slice %48 {offsets = [0, 128], sizes = [1, 128], strides = [1, 1]} : vector<1x384xf32> to vector<1x128xf32>
    %60 = vector.extract_strided_slice %50 {offsets = [0, 128], sizes = [1, 128], strides = [1, 1]} : vector<1x384xf32> to vector<1x128xf32>
    %61 = arith.addf %59, %60 : vector<1x128xf32>
    %62 = arith.negf %61 : vector<1x128xf32>
    %63 = math.exp %62 : vector<1x128xf32>
    %cst_24 = arith.constant 1.000000e+00 : f32
    %64 = vector.broadcast %cst_24 : f32 to vector<1x128xf32>
    %65 = arith.addf %64, %63 : vector<1x128xf32>
    %66 = arith.divf %64, %65 : vector<1x128xf32>
    %67 = vector.extract_strided_slice %48 {offsets = [0, 256], sizes = [1, 128], strides = [1, 1]} : vector<1x384xf32> to vector<1x128xf32>
    %68 = vector.extract_strided_slice %50 {offsets = [0, 256], sizes = [1, 128], strides = [1, 1]} : vector<1x384xf32> to vector<1x128xf32>
    %69 = arith.addf %68, %14 : vector<1x128xf32>
    %70 = arith.mulf %58, %69 : vector<1x128xf32>
    %71 = arith.addf %67, %70 : vector<1x128xf32>
    %72 = math.tanh %71 : vector<1x128xf32>
    %73 = arith.subf %47, %72 : vector<1x128xf32>
    %74 = arith.mulf %66, %73 : vector<1x128xf32>
    %75 = arith.addf %72, %74 : vector<1x128xf32>
    %76 = vector.extract_strided_slice %19 {offsets = [2, 0], sizes = [1, 384], strides = [1, 1]} : vector<8x384xf32> to vector<1x384xf32>
    %c0_25 = arith.constant 0 : index
    %c0_26 = arith.constant 0 : index
    %77 = vector.load %arg5[%c0_25, %c0_26] : memref<128x384xf32, #tpu.memory_space<vmem>>, vector<128x384xf32>
    %cst_27 = arith.constant dense<0.000000e+00> : vector<1x384xf32>
    %78 = tpu.matmul %75, %77, %cst_27 {dimension_numbers = #tpu.dot_dimension_numbers<[1], [0], [0], [1], [0, 0, 1, 1], [], []>} : vector<1x128xf32>, vector<128x384xf32>, vector<1x384xf32> -> vector<1x384xf32>
    %79 = vector.extract_strided_slice %76 {offsets = [0, 0], sizes = [1, 128], strides = [1, 1]} : vector<1x384xf32> to vector<1x128xf32>
    %80 = vector.extract_strided_slice %78 {offsets = [0, 0], sizes = [1, 128], strides = [1, 1]} : vector<1x384xf32> to vector<1x128xf32>
    %81 = arith.addf %79, %80 : vector<1x128xf32>
    %82 = arith.negf %81 : vector<1x128xf32>
    %83 = math.exp %82 : vector<1x128xf32>
    %cst_28 = arith.constant 1.000000e+00 : f32
    %84 = vector.broadcast %cst_28 : f32 to vector<1x128xf32>
    %85 = arith.addf %84, %83 : vector<1x128xf32>
    %86 = arith.divf %84, %85 : vector<1x128xf32>
    %87 = vector.extract_strided_slice %76 {offsets = [0, 128], sizes = [1, 128], strides = [1, 1]} : vector<1x384xf32> to vector<1x128xf32>
    %88 = vector.extract_strided_slice %78 {offsets = [0, 128], sizes = [1, 128], strides = [1, 1]} : vector<1x384xf32> to vector<1x128xf32>
    %89 = arith.addf %87, %88 : vector<1x128xf32>
    %90 = arith.negf %89 : vector<1x128xf32>
    %91 = math.exp %90 : vector<1x128xf32>
    %cst_29 = arith.constant 1.000000e+00 : f32
    %92 = vector.broadcast %cst_29 : f32 to vector<1x128xf32>
    %93 = arith.addf %92, %91 : vector<1x128xf32>
    %94 = arith.divf %92, %93 : vector<1x128xf32>
    %95 = vector.extract_strided_slice %76 {offsets = [0, 256], sizes = [1, 128], strides = [1, 1]} : vector<1x384xf32> to vector<1x128xf32>
    %96 = vector.extract_strided_slice %78 {offsets = [0, 256], sizes = [1, 128], strides = [1, 1]} : vector<1x384xf32> to vector<1x128xf32>
    %97 = arith.addf %96, %14 : vector<1x128xf32>
    %98 = arith.mulf %86, %97 : vector<1x128xf32>
    %99 = arith.addf %95, %98 : vector<1x128xf32>
    %100 = math.tanh %99 : vector<1x128xf32>
    %101 = arith.subf %75, %100 : vector<1x128xf32>
    %102 = arith.mulf %94, %101 : vector<1x128xf32>
    %103 = arith.addf %100, %102 : vector<1x128xf32>
    %104 = vector.extract_strided_slice %19 {offsets = [3, 0], sizes = [1, 384], strides = [1, 1]} : vector<8x384xf32> to vector<1x384xf32>
    %c0_30 = arith.constant 0 : index
    %c0_31 = arith.constant 0 : index
    %105 = vector.load %arg5[%c0_30, %c0_31] : memref<128x384xf32, #tpu.memory_space<vmem>>, vector<128x384xf32>
    %cst_32 = arith.constant dense<0.000000e+00> : vector<1x384xf32>
    %106 = tpu.matmul %103, %105, %cst_32 {dimension_numbers = #tpu.dot_dimension_numbers<[1], [0], [0], [1], [0, 0, 1, 1], [], []>} : vector<1x128xf32>, vector<128x384xf32>, vector<1x384xf32> -> vector<1x384xf32>
    %107 = vector.extract_strided_slice %104 {offsets = [0, 0], sizes = [1, 128], strides = [1, 1]} : vector<1x384xf32> to vector<1x128xf32>
    %108 = vector.extract_strided_slice %106 {offsets = [0, 0], sizes = [1, 128], strides = [1, 1]} : vector<1x384xf32> to vector<1x128xf32>
    %109 = arith.addf %107, %108 : vector<1x128xf32>
    %110 = arith.negf %109 : vector<1x128xf32>
    %111 = math.exp %110 : vector<1x128xf32>
    %cst_33 = arith.constant 1.000000e+00 : f32
    %112 = vector.broadcast %cst_33 : f32 to vector<1x128xf32>
    %113 = arith.addf %112, %111 : vector<1x128xf32>
    %114 = arith.divf %112, %113 : vector<1x128xf32>
    %115 = vector.extract_strided_slice %104 {offsets = [0, 128], sizes = [1, 128], strides = [1, 1]} : vector<1x384xf32> to vector<1x128xf32>
    %116 = vector.extract_strided_slice %106 {offsets = [0, 128], sizes = [1, 128], strides = [1, 1]} : vector<1x384xf32> to vector<1x128xf32>
    %117 = arith.addf %115, %116 : vector<1x128xf32>
    %118 = arith.negf %117 : vector<1x128xf32>
    %119 = math.exp %118 : vector<1x128xf32>
    %cst_34 = arith.constant 1.000000e+00 : f32
    %120 = vector.broadcast %cst_34 : f32 to vector<1x128xf32>
    %121 = arith.addf %120, %119 : vector<1x128xf32>
    %122 = arith.divf %120, %121 : vector<1x128xf32>
    %123 = vector.extract_strided_slice %104 {offsets = [0, 256], sizes = [1, 128], strides = [1, 1]} : vector<1x384xf32> to vector<1x128xf32>
    %124 = vector.extract_strided_slice %106 {offsets = [0, 256], sizes = [1, 128], strides = [1, 1]} : vector<1x384xf32> to vector<1x128xf32>
    %125 = arith.addf %124, %14 : vector<1x128xf32>
    %126 = arith.mulf %114, %125 : vector<1x128xf32>
    %127 = arith.addf %123, %126 : vector<1x128xf32>
    %128 = math.tanh %127 : vector<1x128xf32>
    %129 = arith.subf %103, %128 : vector<1x128xf32>
    %130 = arith.mulf %122, %129 : vector<1x128xf32>
    %131 = arith.addf %128, %130 : vector<1x128xf32>
    %132 = vector.extract_strided_slice %19 {offsets = [4, 0], sizes = [1, 384], strides = [1, 1]} : vector<8x384xf32> to vector<1x384xf32>
    %c0_35 = arith.constant 0 : index
    %c0_36 = arith.constant 0 : index
    %133 = vector.load %arg5[%c0_35, %c0_36] : memref<128x384xf32, #tpu.memory_space<vmem>>, vector<128x384xf32>
    %cst_37 = arith.constant dense<0.000000e+00> : vector<1x384xf32>
    %134 = tpu.matmul %131, %133, %cst_37 {dimension_numbers = #tpu.dot_dimension_numbers<[1], [0], [0], [1], [0, 0, 1, 1], [], []>} : vector<1x128xf32>, vector<128x384xf32>, vector<1x384xf32> -> vector<1x384xf32>
    %135 = vector.extract_strided_slice %132 {offsets = [0, 0], sizes = [1, 128], strides = [1, 1]} : vector<1x384xf32> to vector<1x128xf32>
    %136 = vector.extract_strided_slice %134 {offsets = [0, 0], sizes = [1, 128], strides = [1, 1]} : vector<1x384xf32> to vector<1x128xf32>
    %137 = arith.addf %135, %136 : vector<1x128xf32>
    %138 = arith.negf %137 : vector<1x128xf32>
    %139 = math.exp %138 : vector<1x128xf32>
    %cst_38 = arith.constant 1.000000e+00 : f32
    %140 = vector.broadcast %cst_38 : f32 to vector<1x128xf32>
    %141 = arith.addf %140, %139 : vector<1x128xf32>
    %142 = arith.divf %140, %141 : vector<1x128xf32>
    %143 = vector.extract_strided_slice %132 {offsets = [0, 128], sizes = [1, 128], strides = [1, 1]} : vector<1x384xf32> to vector<1x128xf32>
    %144 = vector.extract_strided_slice %134 {offsets = [0, 128], sizes = [1, 128], strides = [1, 1]} : vector<1x384xf32> to vector<1x128xf32>
    %145 = arith.addf %143, %144 : vector<1x128xf32>
    %146 = arith.negf %145 : vector<1x128xf32>
    %147 = math.exp %146 : vector<1x128xf32>
    %cst_39 = arith.constant 1.000000e+00 : f32
    %148 = vector.broadcast %cst_39 : f32 to vector<1x128xf32>
    %149 = arith.addf %148, %147 : vector<1x128xf32>
    %150 = arith.divf %148, %149 : vector<1x128xf32>
    %151 = vector.extract_strided_slice %132 {offsets = [0, 256], sizes = [1, 128], strides = [1, 1]} : vector<1x384xf32> to vector<1x128xf32>
    %152 = vector.extract_strided_slice %134 {offsets = [0, 256], sizes = [1, 128], strides = [1, 1]} : vector<1x384xf32> to vector<1x128xf32>
    %153 = arith.addf %152, %14 : vector<1x128xf32>
    %154 = arith.mulf %142, %153 : vector<1x128xf32>
    %155 = arith.addf %151, %154 : vector<1x128xf32>
    %156 = math.tanh %155 : vector<1x128xf32>
    %157 = arith.subf %131, %156 : vector<1x128xf32>
    %158 = arith.mulf %150, %157 : vector<1x128xf32>
    %159 = arith.addf %156, %158 : vector<1x128xf32>
    %160 = vector.extract_strided_slice %19 {offsets = [5, 0], sizes = [1, 384], strides = [1, 1]} : vector<8x384xf32> to vector<1x384xf32>
    %c0_40 = arith.constant 0 : index
    %c0_41 = arith.constant 0 : index
    %161 = vector.load %arg5[%c0_40, %c0_41] : memref<128x384xf32, #tpu.memory_space<vmem>>, vector<128x384xf32>
    %cst_42 = arith.constant dense<0.000000e+00> : vector<1x384xf32>
    %162 = tpu.matmul %159, %161, %cst_42 {dimension_numbers = #tpu.dot_dimension_numbers<[1], [0], [0], [1], [0, 0, 1, 1], [], []>} : vector<1x128xf32>, vector<128x384xf32>, vector<1x384xf32> -> vector<1x384xf32>
    %163 = vector.extract_strided_slice %160 {offsets = [0, 0], sizes = [1, 128], strides = [1, 1]} : vector<1x384xf32> to vector<1x128xf32>
    %164 = vector.extract_strided_slice %162 {offsets = [0, 0], sizes = [1, 128], strides = [1, 1]} : vector<1x384xf32> to vector<1x128xf32>
    %165 = arith.addf %163, %164 : vector<1x128xf32>
    %166 = arith.negf %165 : vector<1x128xf32>
    %167 = math.exp %166 : vector<1x128xf32>
    %cst_43 = arith.constant 1.000000e+00 : f32
    %168 = vector.broadcast %cst_43 : f32 to vector<1x128xf32>
    %169 = arith.addf %168, %167 : vector<1x128xf32>
    %170 = arith.divf %168, %169 : vector<1x128xf32>
    %171 = vector.extract_strided_slice %160 {offsets = [0, 128], sizes = [1, 128], strides = [1, 1]} : vector<1x384xf32> to vector<1x128xf32>
    %172 = vector.extract_strided_slice %162 {offsets = [0, 128], sizes = [1, 128], strides = [1, 1]} : vector<1x384xf32> to vector<1x128xf32>
    %173 = arith.addf %171, %172 : vector<1x128xf32>
    %174 = arith.negf %173 : vector<1x128xf32>
    %175 = math.exp %174 : vector<1x128xf32>
    %cst_44 = arith.constant 1.000000e+00 : f32
    %176 = vector.broadcast %cst_44 : f32 to vector<1x128xf32>
    %177 = arith.addf %176, %175 : vector<1x128xf32>
    %178 = arith.divf %176, %177 : vector<1x128xf32>
    %179 = vector.extract_strided_slice %160 {offsets = [0, 256], sizes = [1, 128], strides = [1, 1]} : vector<1x384xf32> to vector<1x128xf32>
    %180 = vector.extract_strided_slice %162 {offsets = [0, 256], sizes = [1, 128], strides = [1, 1]} : vector<1x384xf32> to vector<1x128xf32>
    %181 = arith.addf %180, %14 : vector<1x128xf32>
    %182 = arith.mulf %170, %181 : vector<1x128xf32>
    %183 = arith.addf %179, %182 : vector<1x128xf32>
    %184 = math.tanh %183 : vector<1x128xf32>
    %185 = arith.subf %159, %184 : vector<1x128xf32>
    %186 = arith.mulf %178, %185 : vector<1x128xf32>
    %187 = arith.addf %184, %186 : vector<1x128xf32>
    %188 = vector.extract_strided_slice %19 {offsets = [6, 0], sizes = [1, 384], strides = [1, 1]} : vector<8x384xf32> to vector<1x384xf32>
    %c0_45 = arith.constant 0 : index
    %c0_46 = arith.constant 0 : index
    %189 = vector.load %arg5[%c0_45, %c0_46] : memref<128x384xf32, #tpu.memory_space<vmem>>, vector<128x384xf32>
    %cst_47 = arith.constant dense<0.000000e+00> : vector<1x384xf32>
    %190 = tpu.matmul %187, %189, %cst_47 {dimension_numbers = #tpu.dot_dimension_numbers<[1], [0], [0], [1], [0, 0, 1, 1], [], []>} : vector<1x128xf32>, vector<128x384xf32>, vector<1x384xf32> -> vector<1x384xf32>
    %191 = vector.extract_strided_slice %188 {offsets = [0, 0], sizes = [1, 128], strides = [1, 1]} : vector<1x384xf32> to vector<1x128xf32>
    %192 = vector.extract_strided_slice %190 {offsets = [0, 0], sizes = [1, 128], strides = [1, 1]} : vector<1x384xf32> to vector<1x128xf32>
    %193 = arith.addf %191, %192 : vector<1x128xf32>
    %194 = arith.negf %193 : vector<1x128xf32>
    %195 = math.exp %194 : vector<1x128xf32>
    %cst_48 = arith.constant 1.000000e+00 : f32
    %196 = vector.broadcast %cst_48 : f32 to vector<1x128xf32>
    %197 = arith.addf %196, %195 : vector<1x128xf32>
    %198 = arith.divf %196, %197 : vector<1x128xf32>
    %199 = vector.extract_strided_slice %188 {offsets = [0, 128], sizes = [1, 128], strides = [1, 1]} : vector<1x384xf32> to vector<1x128xf32>
    %200 = vector.extract_strided_slice %190 {offsets = [0, 128], sizes = [1, 128], strides = [1, 1]} : vector<1x384xf32> to vector<1x128xf32>
    %201 = arith.addf %199, %200 : vector<1x128xf32>
    %202 = arith.negf %201 : vector<1x128xf32>
    %203 = math.exp %202 : vector<1x128xf32>
    %cst_49 = arith.constant 1.000000e+00 : f32
    %204 = vector.broadcast %cst_49 : f32 to vector<1x128xf32>
    %205 = arith.addf %204, %203 : vector<1x128xf32>
    %206 = arith.divf %204, %205 : vector<1x128xf32>
    %207 = vector.extract_strided_slice %188 {offsets = [0, 256], sizes = [1, 128], strides = [1, 1]} : vector<1x384xf32> to vector<1x128xf32>
    %208 = vector.extract_strided_slice %190 {offsets = [0, 256], sizes = [1, 128], strides = [1, 1]} : vector<1x384xf32> to vector<1x128xf32>
    %209 = arith.addf %208, %14 : vector<1x128xf32>
    %210 = arith.mulf %198, %209 : vector<1x128xf32>
    %211 = arith.addf %207, %210 : vector<1x128xf32>
    %212 = math.tanh %211 : vector<1x128xf32>
    %213 = arith.subf %187, %212 : vector<1x128xf32>
    %214 = arith.mulf %206, %213 : vector<1x128xf32>
    %215 = arith.addf %212, %214 : vector<1x128xf32>
    %216 = vector.extract_strided_slice %19 {offsets = [7, 0], sizes = [1, 384], strides = [1, 1]} : vector<8x384xf32> to vector<1x384xf32>
    %c0_50 = arith.constant 0 : index
    %c0_51 = arith.constant 0 : index
    %217 = vector.load %arg5[%c0_50, %c0_51] : memref<128x384xf32, #tpu.memory_space<vmem>>, vector<128x384xf32>
    %cst_52 = arith.constant dense<0.000000e+00> : vector<1x384xf32>
    %218 = tpu.matmul %215, %217, %cst_52 {dimension_numbers = #tpu.dot_dimension_numbers<[1], [0], [0], [1], [0, 0, 1, 1], [], []>} : vector<1x128xf32>, vector<128x384xf32>, vector<1x384xf32> -> vector<1x384xf32>
    %219 = vector.extract_strided_slice %216 {offsets = [0, 0], sizes = [1, 128], strides = [1, 1]} : vector<1x384xf32> to vector<1x128xf32>
    %220 = vector.extract_strided_slice %218 {offsets = [0, 0], sizes = [1, 128], strides = [1, 1]} : vector<1x384xf32> to vector<1x128xf32>
    %221 = arith.addf %219, %220 : vector<1x128xf32>
    %222 = arith.negf %221 : vector<1x128xf32>
    %223 = math.exp %222 : vector<1x128xf32>
    %cst_53 = arith.constant 1.000000e+00 : f32
    %224 = vector.broadcast %cst_53 : f32 to vector<1x128xf32>
    %225 = arith.addf %224, %223 : vector<1x128xf32>
    %226 = arith.divf %224, %225 : vector<1x128xf32>
    %227 = vector.extract_strided_slice %216 {offsets = [0, 128], sizes = [1, 128], strides = [1, 1]} : vector<1x384xf32> to vector<1x128xf32>
    %228 = vector.extract_strided_slice %218 {offsets = [0, 128], sizes = [1, 128], strides = [1, 1]} : vector<1x384xf32> to vector<1x128xf32>
    %229 = arith.addf %227, %228 : vector<1x128xf32>
    %230 = arith.negf %229 : vector<1x128xf32>
    %231 = math.exp %230 : vector<1x128xf32>
    %cst_54 = arith.constant 1.000000e+00 : f32
    %232 = vector.broadcast %cst_54 : f32 to vector<1x128xf32>
    %233 = arith.addf %232, %231 : vector<1x128xf32>
    %234 = arith.divf %232, %233 : vector<1x128xf32>
    %235 = vector.extract_strided_slice %216 {offsets = [0, 256], sizes = [1, 128], strides = [1, 1]} : vector<1x384xf32> to vector<1x128xf32>
    %236 = vector.extract_strided_slice %218 {offsets = [0, 256], sizes = [1, 128], strides = [1, 1]} : vector<1x384xf32> to vector<1x128xf32>
    %237 = arith.addf %236, %14 : vector<1x128xf32>
    %238 = arith.mulf %226, %237 : vector<1x128xf32>
    %239 = arith.addf %235, %238 : vector<1x128xf32>
    %240 = math.tanh %239 : vector<1x128xf32>
    %241 = arith.subf %215, %240 : vector<1x128xf32>
    %242 = arith.mulf %234, %241 : vector<1x128xf32>
    %243 = arith.addf %240, %242 : vector<1x128xf32>
    %244 = tpu.concatenate %47, %75, %103, %131, %159, %187, %215, %243 in 0 : vector<1x128xf32>, vector<1x128xf32>, vector<1x128xf32>, vector<1x128xf32>, vector<1x128xf32>, vector<1x128xf32>, vector<1x128xf32>, vector<1x128xf32> -> vector<8x128xf32>
    %245 = arith.index_cast %17 : i32 to index
    %c0_55 = arith.constant 0 : index
    %246 = vector.load %arg8[%245, %c0_55] : memref<8x128xf32, #tpu.memory_space<vmem>>, vector<8x128xf32>
    tpu.vector_store %arg8[%245, %c0_55], %244 {strides = array<i32>} : memref<8x128xf32, #tpu.memory_space<vmem>>, vector<8x128xf32>,
    %c1_i32 = arith.constant 1 : i32
    return
  }
  func.func @transform_0(%arg0: i32) -> (i32, i32) {
    %c0_i32 = arith.constant 0 : i32
    %c0_i32_0 = arith.constant 0 : i32
    %c0_i32_1 = arith.constant 0 : i32
    return %c0_i32, %c0_i32_0 : i32, i32
  }
  func.func @transform_1(%arg0: i32) -> (i32, i32) {
    %c0_i32 = arith.constant 0 : i32
    %c0_i32_0 = arith.constant 0 : i32
    %c0_i32_1 = arith.constant 0 : i32
    return %c0_i32, %c0_i32_0 : i32, i32
  }
  func.func @transform_2(%arg0: i32) -> (i32, i32) {
    %c0_i32 = arith.constant 0 : i32
    %c0_i32_0 = arith.constant 0 : i32
    %c0_i32_1 = arith.constant 0 : i32
    return %c0_i32, %c0_i32_0 : i32, i32
  }
  func.func @transform_3(%arg0: i32) -> (i32, i32) {
    %c0_i32 = arith.constant 0 : i32
    %c0_i32_0 = arith.constant 0 : i32
    %c0_i32_1 = arith.constant 0 : i32
    return %c0_i32, %c0_i32_0 : i32, i32
  }
  func.func @transform_4(%arg0: i32) -> (i32, i32) {
    %c0_i32 = arith.constant 0 : i32
    %c0_i32_0 = arith.constant 0 : i32
    %c0_i32_1 = arith.constant 0 : i32
    return %c0_i32, %c0_i32_0 : i32, i32
  }
  func.func @transform_5(%arg0: i32) -> (i32, i32) {
    %c0_i32 = arith.constant 0 : i32
    %c0_i32_0 = arith.constant 0 : i32
    %c0_i32_1 = arith.constant 0 : i32
    return %c0_i32, %c0_i32_0 : i32, i32
  }
  func.func @transform_6(%arg0: i32) -> (i32, i32) {
    %c0_i32 = arith.constant 0 : i32
    %c0_i32_0 = arith.constant 0 : i32
    %c0_i32_1 = arith.constant 0 : i32
    return %c0_i32, %c0_i32_0 : i32, i32
  }
  func.func @transform_7(%arg0: i32) -> (i32, i32) {
    %c0_i32 = arith.constant 0 : i32
    %c0_i32_0 = arith.constant 0 : i32
    %c0_i32_1 = arith.constant 0 : i32
    return %c0_i32, %c0_i32_0 : i32, i32
  }
}

</mosaic_0001>

<llo_original>
// kernel: tpu_custom_call.1
$region0: #{tpu_custom_call.1}
  #allocation0 [shape = 'u32[]', space=smem, size = 0x4, offset = 0x4, fixed_abs, tag = 'smem constant byte address 0x4 - core index']
  #allocation1 [shape = 'u32[144,128]{1,0:T(1,128)}', space=vmem, size = 0x12000, scoped, tag = 'internal scratch']
  #allocation2 [shape = 'f32[8,384]{1,0:T(8,128)}', space=vmem, size = 0x3000, scoped, tag = 'scratch operand']
  %s0 = inlined_call_operand.vmem [shape: s32[8,1], index: 0, kind: input, shape index: {}]
  %s1 = inlined_call_operand.hbm [shape: f32[128,128], index: 1, kind: input, shape index: {}]
  %s2 = inlined_call_operand.vmem [shape: f32[1,128], index: 2, kind: input, shape index: {}]
  %s3 = inlined_call_operand.hbm [shape: f32[128,384], index: 3, kind: input, shape index: {}]
  %s4 = inlined_call_operand.hbm [shape: f32[128,384], index: 4, kind: input, shape index: {}]
  %s5 = inlined_call_operand.vmem [shape: f32[1,384], index: 5, kind: input, shape index: {}]
  %s6 = inlined_call_operand.vmem [shape: f32[1,128], index: 6, kind: input, shape index: {}]
  %s7 = inlined_call_operand.hbm [shape: f32[8,128], index: 7, kind: output, shape index: {}]
  %s8 = sld [smem:[#allocation0]]
  $region50: #{tpu_custom_call.1} parent=0
    _
  %s10 = ssub.s32 1, %s8
  %s11 = scalar_select 0, %s10, %s8
  $region1: #{tpu_custom_call.1} parent=0
    #allocation3 [shape = 'u8[65536]{0}', space=vmem, size = 0x10000, scoped, tag = 'input window, operand 1, single buffered']
    #allocation4 [shape = 's32[1]{0}', space=sflag, size = 0x4, scoped, tag = 'scoped memory for tpu_custom_call.1']
    #allocation5 [shape = 's32[1]{0}', space=sflag, size = 0x4, scoped, tag = 'scoped memory for tpu_custom_call.1']
    #allocation6 [shape = 'u8[196608]{0}', space=vmem, size = 0x30000, scoped, tag = 'input window, operand 3, single buffered']
    #allocation7 [shape = 's32[1]{0}', space=sflag, size = 0x4, scoped, tag = 'scoped memory for tpu_custom_call.1']
    #allocation8 [shape = 'u8[196608]{0}', space=vmem, size = 0x30000, scoped, tag = 'input window, operand 4, single buffered']
    #allocation9 [shape = 'u8[4096]{0}', space=vmem, size = 0x1000, scoped, tag = 'output window, operand 0, single buffered']
    %12 = vsyncpa [#allocation4], 0
    %13 = vsyncpa [#allocation7], 0
    %14 = vsyncpa [#allocation5], 0
    // Predicated region
    $region2: #{tpu_custom_call.1} parent=1 // pred_check
      _
    $region3: #{tpu_custom_call.1} parent=1 // pred_check_branch
      %16 = sbr.rel (0) target = $region5
    $region4: #{tpu_custom_call.1} parent=1 // pred_region
      _
    $region5: #{tpu_custom_call.1} parent=1 // pred_fallthru
      _
    // Predicated region
    $region6: #{tpu_custom_call.1} parent=1 // pred_check
      _
    $region7: #{tpu_custom_call.1} parent=1 // pred_check_branch
      %18 = sbr.rel (0) target = $region9
    $region8: #{tpu_custom_call.1} parent=1 // pred_region
      %s20 = ssub.s32 2048, 2048
      %21 = vsyncadd [#allocation4], %s20
      %s22 = sshll.u32 [#allocation3], 4
      %s23 = int_to_ptr.vmem [resolvable:$true] %s22
      %28 = dma.hbm_to_vmem [thread:$0]  %s1, 2048, %s23, [#allocation4], 128, 128, 8
    $region9: #{tpu_custom_call.1} parent=1 // pred_fallthru
      _
    // Predicated region
    $region10: #{tpu_custom_call.1} parent=1 // pred_check
      _
    $region11: #{tpu_custom_call.1} parent=1 // pred_check_branch
      %30 = sbr.rel (0) target = $region13
    $region12: #{tpu_custom_call.1} parent=1 // pred_region
      _
    $region13: #{tpu_custom_call.1} parent=1 // pred_fallthru
      _
    // Predicated region
    $region14: #{tpu_custom_call.1} parent=1 // pred_check
      _
    $region15: #{tpu_custom_call.1} parent=1 // pred_check_branch
      %32 = sbr.rel (0) target = $region17
    $region16: #{tpu_custom_call.1} parent=1 // pred_region
      %s34 = ssub.s32 6144, 6144
      %35 = vsyncadd [#allocation7], %s34
      %s36 = sshll.u32 [#allocation6], 4
      %s37 = int_to_ptr.vmem [resolvable:$true] %s36
      %42 = dma.hbm_to_vmem [thread:$0]  %s3, 6144, %s37, [#allocation7], 384, 384, 24
    $region17: #{tpu_custom_call.1} parent=1 // pred_fallthru
      _
    // Predicated region
    $region18: #{tpu_custom_call.1} parent=1 // pred_check
      _
    $region19: #{tpu_custom_call.1} parent=1 // pred_check_branch
      %44 = sbr.rel (0) target = $region21
    $region20: #{tpu_custom_call.1} parent=1 // pred_region
      %s46 = ssub.s32 6144, 6144
      %47 = vsyncadd [#allocation7], %s46
      %s48 = sshll.u32 [#allocation8], 4
      %s49 = int_to_ptr.vmem [resolvable:$true] %s48
      %54 = dma.hbm_to_vmem [thread:$0]  %s4, 6144, %s49, [#allocation7], 384, 384, 24
    $region21: #{tpu_custom_call.1} parent=1 // pred_fallthru
      _
    // Predicated region
    $region22: #{tpu_custom_call.1} parent=1 // pred_check
      _
    $region23: #{tpu_custom_call.1} parent=1 // pred_check_branch
      %56 = sbr.rel (0) target = $region25
    $region24: #{tpu_custom_call.1} parent=1 // pred_region
      _
    $region25: #{tpu_custom_call.1} parent=1 // pred_fallthru
      _
    // Predicated region
    $region26: #{tpu_custom_call.1} parent=1 // pred_check
      _
    $region27: #{tpu_custom_call.1} parent=1 // pred_check_branch
      %58 = sbr.rel (0) target = $region29
    $region28: #{tpu_custom_call.1} parent=1 // pred_region
      _
    $region29: #{tpu_custom_call.1} parent=1 // pred_fallthru
      _
    // Predicated region
    $region30: #{tpu_custom_call.1} parent=1 // pred_check
      _
    $region31: #{tpu_custom_call.1} parent=1 // pred_check_branch
      %60 = sbr.rel (0) target = $region33
    $region32: #{tpu_custom_call.1} parent=1 // pred_region
      %61 = dma.done [#allocation4], 2048
    $region33: #{tpu_custom_call.1} parent=1 // pred_fallthru
      _
    // Predicated region
    $region34: #{tpu_custom_call.1} parent=1 // pred_check
      _
    $region35: #{tpu_custom_call.1} parent=1 // pred_check_branch
      %63 = sbr.rel (0) target = $region37
    $region36: #{tpu_custom_call.1} parent=1 // pred_region
      %64 = dma.done [#allocation7], 6144
    $region37: #{tpu_custom_call.1} parent=1 // pred_fallthru
      _
    // Predicated region
    $region38: #{tpu_custom_call.1} parent=1 // pred_check
      _
    $region39: #{tpu_custom_call.1} parent=1 // pred_check_branch
      %66 = sbr.rel (0) target = $region41
    $region40: #{tpu_custom_call.1} parent=1 // pred_region
      %67 = dma.done [#allocation7], 6144
    $region41: #{tpu_custom_call.1} parent=1 // pred_fallthru
      _
    %v68 = vld [vmem:[%s0] sm:$0xff]
    %v69 = vlaneseq
    %v70 = vand.u32 %v69, 127
    %71 = vset.pattern.permute.xlu0 0
    %72 = vperm.xlu0 %71, %v68
    %v73 = vpop.permute.xlu0 %72
    %vm74 = vcmp.eq.s32.totalorder %v73, %v70
    %v75 = vsel %vm74, 1, 0
    %v76 = vcvt.s32.f32 %v75
    %v77 = vld [vmem:[#allocation3] sm:$0xff]
    %v78 = vld [vmem:[#allocation3 + $0x8] sm:$0xff]
    %v79 = vld [vmem:[#allocation3 + $0x10] sm:$0xff]
    %v80 = vld [vmem:[#allocation3 + $0x18] sm:$0xff]
    %v81 = vld [vmem:[#allocation3 + $0x20] sm:$0xff]
    %v82 = vld [vmem:[#allocation3 + $0x28] sm:$0xff]
    %v83 = vld [vmem:[#allocation3 + $0x30] sm:$0xff]
    %v84 = vld [vmem:[#allocation3 + $0x38] sm:$0xff]
    %v85 = vld [vmem:[#allocation3 + $0x40] sm:$0xff]
    %v86 = vld [vmem:[#allocation3 + $0x48] sm:$0xff]
    %v87 = vld [vmem:[#allocation3 + $0x50] sm:$0xff]
    %v88 = vld [vmem:[#allocation3 + $0x58] sm:$0xff]
    %v89 = vld [vmem:[#allocation3 + $0x60] sm:$0xff]
    %v90 = vld [vmem:[#allocation3 + $0x68] sm:$0xff]
    %v91 = vld [vmem:[#allocation3 + $0x70] sm:$0xff]
    %v92 = vld [vmem:[#allocation3 + $0x78] sm:$0xff]
    %93 = vmatprep.subr.mxu0 0.0
    %94 = vmatpush1.msra.mxu0 %v77
    %95 = vmatprep.subr.mxu0 0.0
    %96 = vmatpush1.msra.mxu0 %v78
    %97 = vmatprep.subr.mxu0 0.0
    %98 = vmatpush1.msra.mxu0 %v79
    %99 = vmatprep.subr.mxu0 0.0
    %100 = vmatpush1.msra.mxu0 %v80
    %101 = vmatprep.subr.mxu0 0.0
    %102 = vmatpush1.msra.mxu0 %v81
    %103 = vmatprep.subr.mxu0 0.0
    %104 = vmatpush1.msra.mxu0 %v82
    %105 = vmatprep.subr.mxu0 0.0
    %106 = vmatpush1.msra.mxu0 %v83
    %107 = vmatprep.subr.mxu0 0.0
    %108 = vmatpush1.msra.mxu0 %v84
    %109 = vmatprep.subr.mxu0 0.0
    %110 = vmatpush1.msra.mxu0 %v85
    %111 = vmatprep.subr.mxu0 0.0
    %112 = vmatpush1.msra.mxu0 %v86
    %113 = vmatprep.subr.mxu0 0.0
    %114 = vmatpush1.msra.mxu0 %v87
    %115 = vmatprep.subr.mxu0 0.0
    %116 = vmatpush1.msra.mxu0 %v88
    %117 = vmatprep.subr.mxu0 0.0
    %118 = vmatpush1.msra.mxu0 %v89
    %119 = vmatprep.subr.mxu0 0.0
    %120 = vmatpush1.msra.mxu0 %v90
    %121 = vmatprep.subr.mxu0 0.0
    %122 = vmatpush1.msra.mxu0 %v91
    %123 = vmatprep.subr.mxu0 0.0
    %124 = vmatpush1.msra.mxu0 %v92
    %125 = vmatprep.subr.mxu0 0.0
    %126 = vmatpush1.msra.mxu0 0.0
    %127 = vmatprep.subr.mxu0 0.0
    %128 = vmatpush1.msra.mxu0 0.0
    %129 = vmatprep.subr.mxu0 0.0
    %130 = vmatpush1.msra.mxu0 0.0
    %131 = vmatprep.subr.mxu0 0.0
    %132 = vmatpush1.msra.mxu0 0.0
    %133 = vmatprep.subr.mxu0 0.0
    %134 = vmatpush1.msra.mxu0 0.0
    %135 = vmatprep.subr.mxu0 0.0
    %136 = vmatpush1.msra.mxu0 0.0
    %137 = vmatprep.subr.mxu0 0.0
    %138 = vmatpush1.msra.mxu0 0.0
    %139 = vmatprep.subr.mxu0 0.0
    %140 = vmatpush1.msra.mxu0 0.0
    %141 = vmatprep.subr.mxu0 0.0
    %142 = vmatpush1.msra.mxu0 0.0
    %143 = vmatprep.subr.mxu0 0.0
    %144 = vmatpush1.msra.mxu0 0.0
    %145 = vmatprep.subr.mxu0 0.0
    %146 = vmatpush1.msra.mxu0 0.0
    %147 = vmatprep.subr.mxu0 0.0
    %148 = vmatpush1.msra.mxu0 0.0
    %149 = vmatprep.subr.mxu0 0.0
    %150 = vmatpush1.msra.mxu0 0.0
    %151 = vmatprep.subr.mxu0 0.0
    %152 = vmatpush1.msra.mxu0 0.0
    %153 = vmatprep.subr.mxu0 0.0
    %154 = vmatpush1.msra.mxu0 0.0
    %155 = vmatprep.subr.mxu0 0.0
    %156 = vmatpush1.msra.mxu0 0.0
    %157 = vmatprep.mubr.f32.mxu0 0.0
    %158 = vmatmul.mubr.f32.gmra.mrb[0].mxu0 %v76
    %v159 = vpop.f32.mrb[0].mxu0
    %v160 = vadd.f32 0.0, %v159
    %v161 = vpop.f32.mrb[0].mxu0
    %162 = vdwg.mxu0
    %v163 = vld [vmem:[#allocation6] sm:$0xff]
    %v164 = vld [vmem:[#allocation6 + $0x8] sm:$0xff]
    %v165 = vld [vmem:[#allocation6 + $0x10] sm:$0xff]
    %v166 = vld [vmem:[#allocation6 + $0x18] sm:$0xff]
    %v167 = vld [vmem:[#allocation6 + $0x20] sm:$0xff]
    %v168 = vld [vmem:[#allocation6 + $0x28] sm:$0xff]
    %v169 = vld [vmem:[#allocation6 + $0x30] sm:$0xff]
    %v170 = vld [vmem:[#allocation6 + $0x38] sm:$0xff]
    %v171 = vld [vmem:[#allocation6 + $0x40] sm:$0xff]
    %v172 = vld [vmem:[#allocation6 + $0x48] sm:$0xff]
    %v173 = vld [vmem:[#allocation6 + $0x50] sm:$0xff]
    %v174 = vld [vmem:[#allocation6 + $0x58] sm:$0xff]
    %v175 = vld [vmem:[#allocation6 + $0x60] sm:$0xff]
    %v176 = vld [vmem:[#allocation6 + $0x68] sm:$0xff]
    %v177 = vld [vmem:[#allocation6 + $0x70] sm:$0xff]
    %v178 = vld [vmem:[#allocation6 + $0x78] sm:$0xff]
    %v179 = vld [vmem:[#allocation6 + $0x80] sm:$0xff]
    %v180 = vld [vmem:[#allocation6 + $0x88] sm:$0xff]
    %v181 = vld [vmem:[#allocation6 + $0x90] sm:$0xff]
    %v182 = vld [vmem:[#allocation6 + $0x98] sm:$0xff]
    %v183 = vld [vmem:[#allocation6 + $0xa0] sm:$0xff]
    %v184 = vld [vmem:[#allocation6 + $0xa8] sm:$0xff]
    %v185 = vld [vmem:[#allocation6 + $0xb0] sm:$0xff]
    %v186 = vld [vmem:[#allocation6 + $0xb8] sm:$0xff]
    %v187 = vld [vmem:[#allocation6 + $0xc0] sm:$0xff]
    %v188 = vld [vmem:[#allocation6 + $0xc8] sm:$0xff]
    %v189 = vld [vmem:[#allocation6 + $0xd0] sm:$0xff]
    %v190 = vld [vmem:[#allocation6 + $0xd8] sm:$0xff]
    %v191 = vld [vmem:[#allocation6 + $0xe0] sm:$0xff]
    %v192 = vld [vmem:[#allocation6 + $0xe8] sm:$0xff]
    %v193 = vld [vmem:[#allocation6 + $0xf0] sm:$0xff]
    %v194 = vld [vmem:[#allocation6 + $0xf8] sm:$0xff]
    %v195 = vld [vmem:[#allocation6 + $0x100] sm:$0xff]
    %v196 = vld [vmem:[#allocation6 + $0x108] sm:$0xff]
    %v197 = vld [vmem:[#allocation6 + $0x110] sm:$0xff]
    %v198 = vld [vmem:[#allocation6 + $0x118] sm:$0xff]
    %v199 = vld [vmem:[#allocation6 + $0x120] sm:$0xff]
    %v200 = vld [vmem:[#allocation6 + $0x128] sm:$0xff]
    %v201 = vld [vmem:[#allocation6 + $0x130] sm:$0xff]
    %v202 = vld [vmem:[#allocation6 + $0x138] sm:$0xff]
    %v203 = vld [vmem:[#allocation6 + $0x140] sm:$0xff]
    %v204 = vld [vmem:[#allocation6 + $0x148] sm:$0xff]
    %v205 = vld [vmem:[#allocation6 + $0x150] sm:$0xff]
    %v206 = vld [vmem:[#allocation6 + $0x158] sm:$0xff]
    %v207 = vld [vmem:[#allocation6 + $0x160] sm:$0xff]
    %v208 = vld [vmem:[#allocation6 + $0x168] sm:$0xff]
    %v209 = vld [vmem:[#allocation6 + $0x170] sm:$0xff]
    %v210 = vld [vmem:[#allocation6 + $0x178] sm:$0xff]
    %v211 = vld [vmem:[%s5] sm:$0x7]
    %v213 = vlaneseq
    %v214 = vshrl.u32 %v213, 7
    %v215 = vsub.s32 0, %v214
    %v216 = vrot.slane %v211, %v215
    %v217 = vlaneseq
    %v218 = vshrl.u32 %v217, 7
    %v219 = vsub.s32 1, %v218
    %v220 = vrot.slane %v211, %v219
    %v221 = vlaneseq
    %v222 = vshrl.u32 %v221, 7
    %v223 = vsub.s32 2, %v222
    %v224 = vrot.slane %v211, %v223
    %228 = vmatprep.subr.mxu0 %v164
    %229 = vmatpush1.msra.mxu0 %v163
    %230 = vmatprep.subr.mxu0 %v167
    %231 = vmatpush1.msra.mxu0 %v166
    %232 = vmatprep.subr.mxu0 %v170
    %233 = vmatpush1.msra.mxu0 %v169
    %234 = vmatprep.subr.mxu0 %v173
    %235 = vmatpush1.msra.mxu0 %v172
    %236 = vmatprep.subr.mxu0 %v176
    %237 = vmatpush1.msra.mxu0 %v175
    %238 = vmatprep.subr.mxu0 %v179
    %239 = vmatpush1.msra.mxu0 %v178
    %240 = vmatprep.subr.mxu0 %v182
    %241 = vmatpush1.msra.mxu0 %v181
    %242 = vmatprep.subr.mxu0 %v185
    %243 = vmatpush1.msra.mxu0 %v184
    %244 = vmatprep.subr.mxu0 %v188
    %245 = vmatpush1.msra.mxu0 %v187
    %246 = vmatprep.subr.mxu0 %v191
    %247 = vmatpush1.msra.mxu0 %v190
    %248 = vmatprep.subr.mxu0 %v194
    %249 = vmatpush1.msra.mxu0 %v193
    %250 = vmatprep.subr.mxu0 %v197
    %251 = vmatpush1.msra.mxu0 %v196
    %252 = vmatprep.subr.mxu0 %v200
    %253 = vmatpush1.msra.mxu0 %v199
    %254 = vmatprep.subr.mxu0 %v203
    %255 = vmatpush1.msra.mxu0 %v202
    %256 = vmatprep.subr.mxu0 %v206
    %257 = vmatpush1.msra.mxu0 %v205
    %258 = vmatprep.subr.mxu0 %v209
    %259 = vmatpush1.msra.mxu0 %v208
    %260 = vmatprep.subr.mxu0 0.0
    %261 = vmatpush1.msra.mxu0 0.0
    %262 = vmatprep.subr.mxu0 0.0
    %263 = vmatpush1.msra.mxu0 0.0
    %264 = vmatprep.subr.mxu0 0.0
    %265 = vmatpush1.msra.mxu0 0.0
    %266 = vmatprep.subr.mxu0 0.0
    %267 = vmatpush1.msra.mxu0 0.0
    %268 = vmatprep.subr.mxu0 0.0
    %269 = vmatpush1.msra.mxu0 0.0
    %270 = vmatprep.subr.mxu0 0.0
    %271 = vmatpush1.msra.mxu0 0.0
    %272 = vmatprep.subr.mxu0 0.0
    %273 = vmatpush1.msra.mxu0 0.0
    %274 = vmatprep.subr.mxu0 0.0
    %275 = vmatpush1.msra.mxu0 0.0
    %276 = vmatprep.subr.mxu0 0.0
    %277 = vmatpush1.msra.mxu0 0.0
    %278 = vmatprep.subr.mxu0 0.0
    %279 = vmatpush1.msra.mxu0 0.0
    %280 = vmatprep.subr.mxu0 0.0
    %281 = vmatpush1.msra.mxu0 0.0
    %282 = vmatprep.subr.mxu0 0.0
    %283 = vmatpush1.msra.mxu0 0.0
    %284 = vmatprep.subr.mxu0 0.0
    %285 = vmatpush1.msra.mxu0 0.0
    %286 = vmatprep.subr.mxu0 0.0
    %287 = vmatpush1.msra.mxu0 0.0
    %288 = vmatprep.subr.mxu0 0.0
    %289 = vmatpush1.msra.mxu0 0.0
    %290 = vmatprep.subr.mxu0 0.0
    %291 = vmatpush1.msra.mxu0 0.0
    %292 = vmatprep.mubr.f32.mxu0 0.0
    %293 = vmatmul.mubr.f32.gmra.mrb[0].mxu0 %v160
    %v294 = vpop.f32.mrb[0].mxu0
    %v295 = vadd.f32 %v216, %v294
    %v296 = vpop.f32.mrb[0].mxu0
    %v297 = vadd.f32 %v220, %v296
    %298 = vdwg.mxu0
    %299 = vmatprep.subr.mxu0 0.0
    %300 = vmatpush1.msra.mxu0 %v165
    %301 = vmatprep.subr.mxu0 0.0
    %302 = vmatpush1.msra.mxu0 %v168
    %303 = vmatprep.subr.mxu0 0.0
    %304 = vmatpush1.msra.mxu0 %v171
    %305 = vmatprep.subr.mxu0 0.0
    %306 = vmatpush1.msra.mxu0 %v174
    %307 = vmatprep.subr.mxu0 0.0
    %308 = vmatpush1.msra.mxu0 %v177
    %309 = vmatprep.subr.mxu0 0.0
    %310 = vmatpush1.msra.mxu0 %v180
    %311 = vmatprep.subr.mxu0 0.0
    %312 = vmatpush1.msra.mxu0 %v183
    %313 = vmatprep.subr.mxu0 0.0
    %314 = vmatpush1.msra.mxu0 %v186
    %315 = vmatprep.subr.mxu0 0.0
    %316 = vmatpush1.msra.mxu0 %v189
    %317 = vmatprep.subr.mxu0 0.0
    %318 = vmatpush1.msra.mxu0 %v192
    %319 = vmatprep.subr.mxu0 0.0
    %320 = vmatpush1.msra.mxu0 %v195
    %321 = vmatprep.subr.mxu0 0.0
    %322 = vmatpush1.msra.mxu0 %v198
    %323 = vmatprep.subr.mxu0 0.0
    %324 = vmatpush1.msra.mxu0 %v201
    %325 = vmatprep.subr.mxu0 0.0
    %326 = vmatpush1.msra.mxu0 %v204
    %327 = vmatprep.subr.mxu0 0.0
    %328 = vmatpush1.msra.mxu0 %v207
    %329 = vmatprep.subr.mxu0 0.0
    %330 = vmatpush1.msra.mxu0 %v210
    %331 = vmatprep.subr.mxu0 0.0
    %332 = vmatpush1.msra.mxu0 0.0
    %333 = vmatprep.subr.mxu0 0.0
    %334 = vmatpush1.msra.mxu0 0.0
    %335 = vmatprep.subr.mxu0 0.0
    %336 = vmatpush1.msra.mxu0 0.0
    %337 = vmatprep.subr.mxu0 0.0
    %338 = vmatpush1.msra.mxu0 0.0
    %339 = vmatprep.subr.mxu0 0.0
    %340 = vmatpush1.msra.mxu0 0.0
    %341 = vmatprep.subr.mxu0 0.0
    %342 = vmatpush1.msra.mxu0 0.0
    %343 = vmatprep.subr.mxu0 0.0
    %344 = vmatpush1.msra.mxu0 0.0
    %345 = vmatprep.subr.mxu0 0.0
    %346 = vmatpush1.msra.mxu0 0.0
    %347 = vmatprep.subr.mxu0 0.0
    %348 = vmatpush1.msra.mxu0 0.0
    %349 = vmatprep.subr.mxu0 0.0
    %350 = vmatpush1.msra.mxu0 0.0
    %351 = vmatprep.subr.mxu0 0.0
    %352 = vmatpush1.msra.mxu0 0.0
    %353 = vmatprep.subr.mxu0 0.0
    %354 = vmatpush1.msra.mxu0 0.0
    %355 = vmatprep.subr.mxu0 0.0
    %356 = vmatpush1.msra.mxu0 0.0
    %357 = vmatprep.subr.mxu0 0.0
    %358 = vmatpush1.msra.mxu0 0.0
    %359 = vmatprep.subr.mxu0 0.0
    %360 = vmatpush1.msra.mxu0 0.0
    %361 = vmatprep.subr.mxu0 0.0
    %362 = vmatpush1.msra.mxu0 0.0
    %363 = vmatprep.mubr.f32.mxu0 0.0
    %364 = vmatmul.mubr.f32.gmra.mrb[0].mxu0 %v160
    %v365 = vpop.f32.mrb[0].mxu0
    %v366 = vadd.f32 %v224, %v365
    %v367 = vpop.f32.mrb[0].mxu0
    %368 = vdwg.mxu0
    %369 = vst [vmem:[#allocation2] sm:$0xff] %v295
    %370 = vst [vmem:[#allocation2 + $0x8] sm:$0xff] %v297
    %371 = vst [vmem:[#allocation2 + $0x10] sm:$0xff] %v366
    %v372 = vld [vmem:[%s6] sm:$0x1]
    %v373 = vld [vmem:[%s2] sm:$0x1]
    %s374 = smul.u32 0, 3
    %s375 = smul.addr %s374, 8
    %s376 = scalar_lea.vmem [#allocation2], %s375
    %v377 = vld [vmem:[%s376] sm:$0xff]
    %v378 = vld [vmem:[%s376 + $0x8] sm:$0xff]
    %v379 = vld [vmem:[%s376 + $0x10] sm:$0xff]
    %v380 = vld [vmem:[#allocation8] sm:$0xff]
    %v381 = vld [vmem:[#allocation8 + $0x8] sm:$0xff]
    %v382 = vld [vmem:[#allocation8 + $0x10] sm:$0xff]
    %v383 = vld [vmem:[#allocation8 + $0x18] sm:$0xff]
    %v384 = vld [vmem:[#allocation8 + $0x20] sm:$0xff]
    %v385 = vld [vmem:[#allocation8 + $0x28] sm:$0xff]
    %v386 = vld [vmem:[#allocation8 + $0x30] sm:$0xff]
    %v387 = vld [vmem:[#allocation8 + $0x38] sm:$0xff]
    %v388 = vld [vmem:[#allocation8 + $0x40] sm:$0xff]
    %v389 = vld [vmem:[#allocation8 + $0x48] sm:$0xff]
    %v390 = vld [vmem:[#allocation8 + $0x50] sm:$0xff]
    %v391 = vld [vmem:[#allocation8 + $0x58] sm:$0xff]
    %v392 = vld [vmem:[#allocation8 + $0x60] sm:$0xff]
    %v393 = vld [vmem:[#allocation8 + $0x68] sm:$0xff]
    %v394 = vld [vmem:[#allocation8 + $0x70] sm:$0xff]
    %v395 = vld [vmem:[#allocation8 + $0x78] sm:$0xff]
    %v396 = vld [vmem:[#allocation8 + $0x80] sm:$0xff]
    %v397 = vld [vmem:[#allocation8 + $0x88] sm:$0xff]
    %v398 = vld [vmem:[#allocation8 + $0x90] sm:$0xff]
    %v399 = vld [vmem:[#allocation8 + $0x98] sm:$0xff]
    %v400 = vld [vmem:[#allocation8 + $0xa0] sm:$0xff]
    %v401 = vld [vmem:[#allocation8 + $0xa8] sm:$0xff]
    %v402 = vld [vmem:[#allocation8 + $0xb0] sm:$0xff]
    %v403 = vld [vmem:[#allocation8 + $0xb8] sm:$0xff]
    %v404 = vld [vmem:[#allocation8 + $0xc0] sm:$0xff]
    %v405 = vld [vmem:[#allocation8 + $0xc8] sm:$0xff]
    %v406 = vld [vmem:[#allocation8 + $0xd0] sm:$0xff]
    %v407 = vld [vmem:[#allocation8 + $0xd8] sm:$0xff]
    %v408 = vld [vmem:[#allocation8 + $0xe0] sm:$0xff]
    %v409 = vld [vmem:[#allocation8 + $0xe8] sm:$0xff]
    %v410 = vld [vmem:[#allocation8 + $0xf0] sm:$0xff]
    %v411 = vld [vmem:[#allocation8 + $0xf8] sm:$0xff]
    %v412 = vld [vmem:[#allocation8 + $0x100] sm:$0xff]
    %v413 = vld [vmem:[#allocation8 + $0x108] sm:$0xff]
    %v414 = vld [vmem:[#allocation8 + $0x110] sm:$0xff]
    %v415 = vld [vmem:[#allocation8 + $0x118] sm:$0xff]
    %v416 = vld [vmem:[#allocation8 + $0x120] sm:$0xff]
    %v417 = vld [vmem:[#allocation8 + $0x128] sm:$0xff]
    %v418 = vld [vmem:[#allocation8 + $0x130] sm:$0xff]
    %v419 = vld [vmem:[#allocation8 + $0x138] sm:$0xff]
    %v420 = vld [vmem:[#allocation8 + $0x140] sm:$0xff]
    %v421 = vld [vmem:[#allocation8 + $0x148] sm:$0xff]
    %v422 = vld [vmem:[#allocation8 + $0x150] sm:$0xff]
    %v423 = vld [vmem:[#allocation8 + $0x158] sm:$0xff]
    %v424 = vld [vmem:[#allocation8 + $0x160] sm:$0xff]
    %v425 = vld [vmem:[#allocation8 + $0x168] sm:$0xff]
    %v426 = vld [vmem:[#allocation8 + $0x170] sm:$0xff]
    %v427 = vld [vmem:[#allocation8 + $0x178] sm:$0xff]
    %428 = vmatprep.subr.mxu0 %v381
    %429 = vmatpush1.msra.mxu0 %v380
    %430 = vmatprep.subr.mxu0 %v384
    %431 = vmatpush1.msra.mxu0 %v383
    %432 = vmatprep.subr.mxu0 %v387
    %433 = vmatpush1.msra.mxu0 %v386
    %434 = vmatprep.subr.mxu0 %v390
    %435 = vmatpush1.msra.mxu0 %v389
    %436 = vmatprep.subr.mxu0 %v393
    %437 = vmatpush1.msra.mxu0 %v392
    %438 = vmatprep.subr.mxu0 %v396
    %439 = vmatpush1.msra.mxu0 %v395
    %440 = vmatprep.subr.mxu0 %v399
    %441 = vmatpush1.msra.mxu0 %v398
    %442 = vmatprep.subr.mxu0 %v402
    %443 = vmatpush1.msra.mxu0 %v401
    %444 = vmatprep.subr.mxu0 %v405
    %445 = vmatpush1.msra.mxu0 %v404
    %446 = vmatprep.subr.mxu0 %v408
    %447 = vmatpush1.msra.mxu0 %v407
    %448 = vmatprep.subr.mxu0 %v411
    %449 = vmatpush1.msra.mxu0 %v410
    %450 = vmatprep.subr.mxu0 %v414
    %451 = vmatpush1.msra.mxu0 %v413
    %452 = vmatprep.subr.mxu0 %v417
    %453 = vmatpush1.msra.mxu0 %v416
    %454 = vmatprep.subr.mxu0 %v420
    %455 = vmatpush1.msra.mxu0 %v419
    %456 = vmatprep.subr.mxu0 %v423
    %457 = vmatpush1.msra.mxu0 %v422
    %458 = vmatprep.subr.mxu0 %v426
    %459 = vmatpush1.msra.mxu0 %v425
    %460 = vmatprep.subr.mxu0 0.0
    %461 = vmatpush1.msra.mxu0 0.0
    %462 = vmatprep.subr.mxu0 0.0
    %463 = vmatpush1.msra.mxu0 0.0
    %464 = vmatprep.subr.mxu0 0.0
    %465 = vmatpush1.msra.mxu0 0.0
    %466 = vmatprep.subr.mxu0 0.0
    %467 = vmatpush1.msra.mxu0 0.0
    %468 = vmatprep.subr.mxu0 0.0
    %469 = vmatpush1.msra.mxu0 0.0
    %470 = vmatprep.subr.mxu0 0.0
    %471 = vmatpush1.msra.mxu0 0.0
    %472 = vmatprep.subr.mxu0 0.0
    %473 = vmatpush1.msra.mxu0 0.0
    %474 = vmatprep.subr.mxu0 0.0
    %475 = vmatpush1.msra.mxu0 0.0
    %476 = vmatprep.subr.mxu0 0.0
    %477 = vmatpush1.msra.mxu0 0.0
    %478 = vmatprep.subr.mxu0 0.0
    %479 = vmatpush1.msra.mxu0 0.0
    %480 = vmatprep.subr.mxu0 0.0
    %481 = vmatpush1.msra.mxu0 0.0
    %482 = vmatprep.subr.mxu0 0.0
    %483 = vmatpush1.msra.mxu0 0.0
    %484 = vmatprep.subr.mxu0 0.0
    %485 = vmatpush1.msra.mxu0 0.0
    %486 = vmatprep.subr.mxu0 0.0
    %487 = vmatpush1.msra.mxu0 0.0
    %488 = vmatprep.subr.mxu0 0.0
    %489 = vmatpush1.msra.mxu0 0.0
    %490 = vmatprep.subr.mxu0 0.0
    %491 = vmatpush1.msra.mxu0 0.0
    %492 = vmatprep.mubr.f32.mxu0 0.0
    %493 = vmatmul.mubr.f32.gmra.mrb[0].mxu0 %v373
    %v494 = vpop.f32.mrb[0].mxu0
    %v495 = vadd.f32 0.0, %v494
    %v496 = vpop.f32.mrb[0].mxu0
    %v497 = vadd.f32 0.0, %v496
    %498 = vdwg.mxu0
    %499 = vmatprep.subr.mxu0 0.0
    %500 = vmatpush1.msra.mxu0 %v382
    %501 = vmatprep.subr.mxu0 0.0
    %502 = vmatpush1.msra.mxu0 %v385
    %503 = vmatprep.subr.mxu0 0.0
    %504 = vmatpush1.msra.mxu0 %v388
    %505 = vmatprep.subr.mxu0 0.0
    %506 = vmatpush1.msra.mxu0 %v391
    %507 = vmatprep.subr.mxu0 0.0
    %508 = vmatpush1.msra.mxu0 %v394
    %509 = vmatprep.subr.mxu0 0.0
    %510 = vmatpush1.msra.mxu0 %v397
    %511 = vmatprep.subr.mxu0 0.0
    %512 = vmatpush1.msra.mxu0 %v400
    %513 = vmatprep.subr.mxu0 0.0
    %514 = vmatpush1.msra.mxu0 %v403
    %515 = vmatprep.subr.mxu0 0.0
    %516 = vmatpush1.msra.mxu0 %v406
    %517 = vmatprep.subr.mxu0 0.0
    %518 = vmatpush1.msra.mxu0 %v409
    %519 = vmatprep.subr.mxu0 0.0
    %520 = vmatpush1.msra.mxu0 %v412
    %521 = vmatprep.subr.mxu0 0.0
    %522 = vmatpush1.msra.mxu0 %v415
    %523 = vmatprep.subr.mxu0 0.0
    %524 = vmatpush1.msra.mxu0 %v418
    %525 = vmatprep.subr.mxu0 0.0
    %526 = vmatpush1.msra.mxu0 %v421
    %527 = vmatprep.subr.mxu0 0.0
    %528 = vmatpush1.msra.mxu0 %v424
    %529 = vmatprep.subr.mxu0 0.0
    %530 = vmatpush1.msra.mxu0 %v427
    %531 = vmatprep.subr.mxu0 0.0
    %532 = vmatpush1.msra.mxu0 0.0
    %533 = vmatprep.subr.mxu0 0.0
    %534 = vmatpush1.msra.mxu0 0.0
    %535 = vmatprep.subr.mxu0 0.0
    %536 = vmatpush1.msra.mxu0 0.0
    %537 = vmatprep.subr.mxu0 0.0
    %538 = vmatpush1.msra.mxu0 0.0
    %539 = vmatprep.subr.mxu0 0.0
    %540 = vmatpush1.msra.mxu0 0.0
    %541 = vmatprep.subr.mxu0 0.0
    %542 = vmatpush1.msra.mxu0 0.0
    %543 = vmatprep.subr.mxu0 0.0
    %544 = vmatpush1.msra.mxu0 0.0
    %545 = vmatprep.subr.mxu0 0.0
    %546 = vmatpush1.msra.mxu0 0.0
    %547 = vmatprep.subr.mxu0 0.0
    %548 = vmatpush1.msra.mxu0 0.0
    %549 = vmatprep.subr.mxu0 0.0
    %550 = vmatpush1.msra.mxu0 0.0
    %551 = vmatprep.subr.mxu0 0.0
    %552 = vmatpush1.msra.mxu0 0.0
    %553 = vmatprep.subr.mxu0 0.0
    %554 = vmatpush1.msra.mxu0 0.0
    %555 = vmatprep.subr.mxu0 0.0
    %556 = vmatpush1.msra.mxu0 0.0
    %557 = vmatprep.subr.mxu0 0.0
    %558 = vmatpush1.msra.mxu0 0.0
    %559 = vmatprep.subr.mxu0 0.0
    %560 = vmatpush1.msra.mxu0 0.0
    %561 = vmatprep.subr.mxu0 0.0
    %562 = vmatpush1.msra.mxu0 0.0
    %563 = vmatprep.mubr.f32.mxu0 0.0
    %564 = vmatmul.mubr.f32.gmra.mrb[0].mxu0 %v373
    %v565 = vpop.f32.mrb[0].mxu0
    %v566 = vadd.f32 0.0, %v565
    %v567 = vpop.f32.mrb[0].mxu0
    %568 = vdwg.mxu0
    %v569 = vadd.f32 %v377, %v495
    %v570 = vxor.u32 %v569, 2147483648
    %v571 = vmul.f32 %v570, 1.442695
    %v572 = vpow.pop %v571
    %v573 = vadd.f32 %v572, 1.0
    %v574 = vrcp.pop %v573
    %v575 = vmul.f32 1.0, %v574
    %v576 = vadd.f32 %v378, %v497
    %v577 = vxor.u32 %v576, 2147483648
    %v578 = vmul.f32 %v577, 1.442695
    %v579 = vpow.pop %v578
    %v580 = vadd.f32 %v579, 1.0
    %v581 = vrcp.pop %v580
    %v582 = vmul.f32 1.0, %v581
    %v583 = vadd.f32 %v566, %v372
    %v584 = vmul.f32 %v575, %v583
    %v585 = vadd.f32 %v379, %v584
    %v586 = vtanh.pop %v585
    %v587 = vsub.f32 %v373, %v586
    %v588 = vmul.f32 %v582, %v587
    %v589 = vadd.f32 %v586, %v588
    %590 = vmatprep.subr.mxu0 %v381
    %591 = vmatpush1.msra.mxu0 %v380
    %592 = vmatprep.subr.mxu0 %v384
    %593 = vmatpush1.msra.mxu0 %v383
    %594 = vmatprep.subr.mxu0 %v387
    %595 = vmatpush1.msra.mxu0 %v386
    %596 = vmatprep.subr.mxu0 %v390
    %597 = vmatpush1.msra.mxu0 %v389
    %598 = vmatprep.subr.mxu0 %v393
    %599 = vmatpush1.msra.mxu0 %v392
    %600 = vmatprep.subr.mxu0 %v396
    %601 = vmatpush1.msra.mxu0 %v395
    %602 = vmatprep.subr.mxu0 %v399
    %603 = vmatpush1.msra.mxu0 %v398
    %604 = vmatprep.subr.mxu0 %v402
    %605 = vmatpush1.msra.mxu0 %v401
    %606 = vmatprep.subr.mxu0 %v405
    %607 = vmatpush1.msra.mxu0 %v404
    %608 = vmatprep.subr.mxu0 %v408
    %609 = vmatpush1.msra.mxu0 %v407
    %610 = vmatprep.subr.mxu0 %v411
    %611 = vmatpush1.msra.mxu0 %v410
    %612 = vmatprep.subr.mxu0 %v414
    %613 = vmatpush1.msra.mxu0 %v413
    %614 = vmatprep.subr.mxu0 %v417
    %615 = vmatpush1.msra.mxu0 %v416
    %616 = vmatprep.subr.mxu0 %v420
    %617 = vmatpush1.msra.mxu0 %v419
    %618 = vmatprep.subr.mxu0 %v423
    %619 = vmatpush1.msra.mxu0 %v422
    %620 = vmatprep.subr.mxu0 %v426
    %621 = vmatpush1.msra.mxu0 %v425
    %622 = vmatprep.subr.mxu0 0.0
    %623 = vmatpush1.msra.mxu0 0.0
    %624 = vmatprep.subr.mxu0 0.0
    %625 = vmatpush1.msra.mxu0 0.0
    %626 = vmatprep.subr.mxu0 0.0
    %627 = vmatpush1.msra.mxu0 0.0
    %628 = vmatprep.subr.mxu0 0.0
    %629 = vmatpush1.msra.mxu0 0.0
    %630 = vmatprep.subr.mxu0 0.0
    %631 = vmatpush1.msra.mxu0 0.0
    %632 = vmatprep.subr.mxu0 0.0
    %633 = vmatpush1.msra.mxu0 0.0
    %634 = vmatprep.subr.mxu0 0.0
    %635 = vmatpush1.msra.mxu0 0.0
    %636 = vmatprep.subr.mxu0 0.0
    %637 = vmatpush1.msra.mxu0 0.0
    %638 = vmatprep.subr.mxu0 0.0
    %639 = vmatpush1.msra.mxu0 0.0
    %640 = vmatprep.subr.mxu0 0.0
    %641 = vmatpush1.msra.mxu0 0.0
    %642 = vmatprep.subr.mxu0 0.0
    %643 = vmatpush1.msra.mxu0 0.0
    %644 = vmatprep.subr.mxu0 0.0
    %645 = vmatpush1.msra.mxu0 0.0
    %646 = vmatprep.subr.mxu0 0.0
    %647 = vmatpush1.msra.mxu0 0.0
    %648 = vmatprep.subr.mxu0 0.0
    %649 = vmatpush1.msra.mxu0 0.0
    %650 = vmatprep.subr.mxu0 0.0
    %651 = vmatpush1.msra.mxu0 0.0
    %652 = vmatprep.subr.mxu0 0.0
    %653 = vmatpush1.msra.mxu0 0.0
    %654 = vmatprep.mubr.f32.mxu0 0.0
    %655 = vmatmul.mubr.f32.gmra.mrb[0].mxu0 %v589
    %v656 = vpop.f32.mrb[0].mxu0
    %v657 = vadd.f32 0.0, %v656
    %v658 = vpop.f32.mrb[0].mxu0
    %v659 = vadd.f32 0.0, %v658
    %660 = vdwg.mxu0
    %661 = vmatprep.subr.mxu0 0.0
    %662 = vmatpush1.msra.mxu0 %v382
    %663 = vmatprep.subr.mxu0 0.0
    %664 = vmatpush1.msra.mxu0 %v385
    %665 = vmatprep.subr.mxu0 0.0
    %666 = vmatpush1.msra.mxu0 %v388
    %667 = vmatprep.subr.mxu0 0.0
    %668 = vmatpush1.msra.mxu0 %v391
    %669 = vmatprep.subr.mxu0 0.0
    %670 = vmatpush1.msra.mxu0 %v394
    %671 = vmatprep.subr.mxu0 0.0
    %672 = vmatpush1.msra.mxu0 %v397
    %673 = vmatprep.subr.mxu0 0.0
    %674 = vmatpush1.msra.mxu0 %v400
    %675 = vmatprep.subr.mxu0 0.0
    %676 = vmatpush1.msra.mxu0 %v403
    %677 = vmatprep.subr.mxu0 0.0
    %678 = vmatpush1.msra.mxu0 %v406
    %679 = vmatprep.subr.mxu0 0.0
    %680 = vmatpush1.msra.mxu0 %v409
    %681 = vmatprep.subr.mxu0 0.0
    %682 = vmatpush1.msra.mxu0 %v412
    %683 = vmatprep.subr.mxu0 0.0
    %684 = vmatpush1.msra.mxu0 %v415
    %685 = vmatprep.subr.mxu0 0.0
    %686 = vmatpush1.msra.mxu0 %v418
    %687 = vmatprep.subr.mxu0 0.0
    %688 = vmatpush1.msra.mxu0 %v421
    %689 = vmatprep.subr.mxu0 0.0
    %690 = vmatpush1.msra.mxu0 %v424
    %691 = vmatprep.subr.mxu0 0.0
    %692 = vmatpush1.msra.mxu0 %v427
    %693 = vmatprep.subr.mxu0 0.0
    %694 = vmatpush1.msra.mxu0 0.0
    %695 = vmatprep.subr.mxu0 0.0
    %696 = vmatpush1.msra.mxu0 0.0
    %697 = vmatprep.subr.mxu0 0.0
    %698 = vmatpush1.msra.mxu0 0.0
    %699 = vmatprep.subr.mxu0 0.0
    %700 = vmatpush1.msra.mxu0 0.0
    %701 = vmatprep.subr.mxu0 0.0
    %702 = vmatpush1.msra.mxu0 0.0
    %703 = vmatprep.subr.mxu0 0.0
    %704 = vmatpush1.msra.mxu0 0.0
    %705 = vmatprep.subr.mxu0 0.0
    %706 = vmatpush1.msra.mxu0 0.0
    %707 = vmatprep.subr.mxu0 0.0
    %708 = vmatpush1.msra.mxu0 0.0
    %709 = vmatprep.subr.mxu0 0.0
    %710 = vmatpush1.msra.mxu0 0.0
    %711 = vmatprep.subr.mxu0 0.0
    %712 = vmatpush1.msra.mxu0 0.0
    %713 = vmatprep.subr.mxu0 0.0
    %714 = vmatpush1.msra.mxu0 0.0
    %715 = vmatprep.subr.mxu0 0.0
    %716 = vmatpush1.msra.mxu0 0.0
    %717 = vmatprep.subr.mxu0 0.0
    %718 = vmatpush1.msra.mxu0 0.0
    %719 = vmatprep.subr.mxu0 0.0
    %720 = vmatpush1.msra.mxu0 0.0
    %721 = vmatprep.subr.mxu0 0.0
    %722 = vmatpush1.msra.mxu0 0.0
    %723 = vmatprep.subr.mxu0 0.0
    %724 = vmatpush1.msra.mxu0 0.0
    %725 = vmatprep.mubr.f32.mxu0 0.0
    %726 = vmatmul.mubr.f32.gmra.mrb[0].mxu0 %v589
    %v727 = vpop.f32.mrb[0].mxu0
    %v728 = vadd.f32 0.0, %v727
    %v729 = vpop.f32.mrb[0].mxu0
    %730 = vdwg.mxu0
    %v732 = vrot.slane %v657, 7
    %v734 = vadd.f32 %v377, %v732
    %v735 = vxor.u32 %v734, 2147483648
    %v736 = vmul.f32 %v735, 1.442695
    %v737 = vpow.pop %v736
    %v738 = vadd.f32 %v737, 1.0
    %v739 = vrcp.pop %v738
    %v740 = vmul.f32 1.0, %v739
    %v742 = vrot.slane %v659, 7
    %v744 = vadd.f32 %v378, %v742
    %v745 = vxor.u32 %v744, 2147483648
    %v746 = vmul.f32 %v745, 1.442695
    %v747 = vpow.pop %v746
    %v748 = vadd.f32 %v747, 1.0
    %v749 = vrcp.pop %v748
    %v750 = vmul.f32 1.0, %v749
    %v751 = vadd.f32 %v728, %v372
    %v753 = vrot.slane %v751, 7
    %v755 = vmul.f32 %v740, %v753
    %v756 = vadd.f32 %v379, %v755
    %v757 = vtanh.pop %v756
    %v759 = vrot.slane %v757, 1
    %v761 = vsub.f32 %v589, %v759
    %v763 = vrot.slane %v761, 7
    %v765 = vmul.f32 %v750, %v763
    %v766 = vadd.f32 %v757, %v765
    %v768 = vrot.slane %v766, 1
    %770 = vmatprep.subr.mxu0 %v381
    %771 = vmatpush1.msra.mxu0 %v380
    %772 = vmatprep.subr.mxu0 %v384
    %773 = vmatpush1.msra.mxu0 %v383
    %774 = vmatprep.subr.mxu0 %v387
    %775 = vmatpush1.msra.mxu0 %v386
    %776 = vmatprep.subr.mxu0 %v390
    %777 = vmatpush1.msra.mxu0 %v389
    %778 = vmatprep.subr.mxu0 %v393
    %779 = vmatpush1.msra.mxu0 %v392
    %780 = vmatprep.subr.mxu0 %v396
    %781 = vmatpush1.msra.mxu0 %v395
    %782 = vmatprep.subr.mxu0 %v399
    %783 = vmatpush1.msra.mxu0 %v398
    %784 = vmatprep.subr.mxu0 %v402
    %785 = vmatpush1.msra.mxu0 %v401
    %786 = vmatprep.subr.mxu0 %v405
    %787 = vmatpush1.msra.mxu0 %v404
    %788 = vmatprep.subr.mxu0 %v408
    %789 = vmatpush1.msra.mxu0 %v407
    %790 = vmatprep.subr.mxu0 %v411
    %791 = vmatpush1.msra.mxu0 %v410
    %792 = vmatprep.subr.mxu0 %v414
    %793 = vmatpush1.msra.mxu0 %v413
    %794 = vmatprep.subr.mxu0 %v417
    %795 = vmatpush1.msra.mxu0 %v416
    %796 = vmatprep.subr.mxu0 %v420
    %797 = vmatpush1.msra.mxu0 %v419
    %798 = vmatprep.subr.mxu0 %v423
    %799 = vmatpush1.msra.mxu0 %v422
    %800 = vmatprep.subr.mxu0 %v426
    %801 = vmatpush1.msra.mxu0 %v425
    %802 = vmatprep.subr.mxu0 0.0
    %803 = vmatpush1.msra.mxu0 0.0
    %804 = vmatprep.subr.mxu0 0.0
    %805 = vmatpush1.msra.mxu0 0.0
    %806 = vmatprep.subr.mxu0 0.0
    %807 = vmatpush1.msra.mxu0 0.0
    %808 = vmatprep.subr.mxu0 0.0
    %809 = vmatpush1.msra.mxu0 0.0
    %810 = vmatprep.subr.mxu0 0.0
    %811 = vmatpush1.msra.mxu0 0.0
    %812 = vmatprep.subr.mxu0 0.0
    %813 = vmatpush1.msra.mxu0 0.0
    %814 = vmatprep.subr.mxu0 0.0
    %815 = vmatpush1.msra.mxu0 0.0
    %816 = vmatprep.subr.mxu0 0.0
    %817 = vmatpush1.msra.mxu0 0.0
    %818 = vmatprep.subr.mxu0 0.0
    %819 = vmatpush1.msra.mxu0 0.0
    %820 = vmatprep.subr.mxu0 0.0
    %821 = vmatpush1.msra.mxu0 0.0
    %822 = vmatprep.subr.mxu0 0.0
    %823 = vmatpush1.msra.mxu0 0.0
    %824 = vmatprep.subr.mxu0 0.0
    %825 = vmatpush1.msra.mxu0 0.0
    %826 = vmatprep.subr.mxu0 0.0
    %827 = vmatpush1.msra.mxu0 0.0
    %828 = vmatprep.subr.mxu0 0.0
    %829 = vmatpush1.msra.mxu0 0.0
    %830 = vmatprep.subr.mxu0 0.0
    %831 = vmatpush1.msra.mxu0 0.0
    %832 = vmatprep.subr.mxu0 0.0
    %833 = vmatpush1.msra.mxu0 0.0
    %834 = vmatprep.mubr.f32.mxu0 0.0
    %835 = vmatmul.mubr.f32.gmra.mrb[0].mxu0 %v768
    %v836 = vpop.f32.mrb[0].mxu0
    %v837 = vadd.f32 0.0, %v836
    %v838 = vpop.f32.mrb[0].mxu0
    %v839 = vadd.f32 0.0, %v838
    %840 = vdwg.mxu0
    %841 = vmatprep.subr.mxu0 0.0
    %842 = vmatpush1.msra.mxu0 %v382
    %843 = vmatprep.subr.mxu0 0.0
    %844 = vmatpush1.msra.mxu0 %v385
    %845 = vmatprep.subr.mxu0 0.0
    %846 = vmatpush1.msra.mxu0 %v388
    %847 = vmatprep.subr.mxu0 0.0
    %848 = vmatpush1.msra.mxu0 %v391
    %849 = vmatprep.subr.mxu0 0.0
    %850 = vmatpush1.msra.mxu0 %v394
    %851 = vmatprep.subr.mxu0 0.0
    %852 = vmatpush1.msra.mxu0 %v397
    %853 = vmatprep.subr.mxu0 0.0
    %854 = vmatpush1.msra.mxu0 %v400
    %855 = vmatprep.subr.mxu0 0.0
    %856 = vmatpush1.msra.mxu0 %v403
    %857 = vmatprep.subr.mxu0 0.0
    %858 = vmatpush1.msra.mxu0 %v406
    %859 = vmatprep.subr.mxu0 0.0
    %860 = vmatpush1.msra.mxu0 %v409
    %861 = vmatprep.subr.mxu0 0.0
    %862 = vmatpush1.msra.mxu0 %v412
    %863 = vmatprep.subr.mxu0 0.0
    %864 = vmatpush1.msra.mxu0 %v415
    %865 = vmatprep.subr.mxu0 0.0
    %866 = vmatpush1.msra.mxu0 %v418
    %867 = vmatprep.subr.mxu0 0.0
    %868 = vmatpush1.msra.mxu0 %v421
    %869 = vmatprep.subr.mxu0 0.0
    %870 = vmatpush1.msra.mxu0 %v424
    %871 = vmatprep.subr.mxu0 0.0
    %872 = vmatpush1.msra.mxu0 %v427
    %873 = vmatprep.subr.mxu0 0.0
    %874 = vmatpush1.msra.mxu0 0.0
    %875 = vmatprep.subr.mxu0 0.0
    %876 = vmatpush1.msra.mxu0 0.0
    %877 = vmatprep.subr.mxu0 0.0
    %878 = vmatpush1.msra.mxu0 0.0
    %879 = vmatprep.subr.mxu0 0.0
    %880 = vmatpush1.msra.mxu0 0.0
    %881 = vmatprep.subr.mxu0 0.0
    %882 = vmatpush1.msra.mxu0 0.0
    %883 = vmatprep.subr.mxu0 0.0
    %884 = vmatpush1.msra.mxu0 0.0
    %885 = vmatprep.subr.mxu0 0.0
    %886 = vmatpush1.msra.mxu0 0.0
    %887 = vmatprep.subr.mxu0 0.0
    %888 = vmatpush1.msra.mxu0 0.0
    %889 = vmatprep.subr.mxu0 0.0
    %890 = vmatpush1.msra.mxu0 0.0
    %891 = vmatprep.subr.mxu0 0.0
    %892 = vmatpush1.msra.mxu0 0.0
    %893 = vmatprep.subr.mxu0 0.0
    %894 = vmatpush1.msra.mxu0 0.0
    %895 = vmatprep.subr.mxu0 0.0
    %896 = vmatpush1.msra.mxu0 0.0
    %897 = vmatprep.subr.mxu0 0.0
    %898 = vmatpush1.msra.mxu0 0.0
    %899 = vmatprep.subr.mxu0 0.0
    %900 = vmatpush1.msra.mxu0 0.0
    %901 = vmatprep.subr.mxu0 0.0
    %902 = vmatpush1.msra.mxu0 0.0
    %903 = vmatprep.subr.mxu0 0.0
    %904 = vmatpush1.msra.mxu0 0.0
    %905 = vmatprep.mubr.f32.mxu0 0.0
    %906 = vmatmul.mubr.f32.gmra.mrb[0].mxu0 %v768
    %v907 = vpop.f32.mrb[0].mxu0
    %v908 = vadd.f32 0.0, %v907
    %v909 = vpop.f32.mrb[0].mxu0
    %910 = vdwg.mxu0
    %v912 = vrot.slane %v837, 6
    %v914 = vadd.f32 %v377, %v912
    %v915 = vxor.u32 %v914, 2147483648
    %v916 = vmul.f32 %v915, 1.442695
    %v917 = vpow.pop %v916
    %v918 = vadd.f32 %v917, 1.0
    %v919 = vrcp.pop %v918
    %v920 = vmul.f32 1.0, %v919
    %v922 = vrot.slane %v839, 6
    %v924 = vadd.f32 %v378, %v922
    %v925 = vxor.u32 %v924, 2147483648
    %v926 = vmul.f32 %v925, 1.442695
    %v927 = vpow.pop %v926
    %v928 = vadd.f32 %v927, 1.0
    %v929 = vrcp.pop %v928
    %v930 = vmul.f32 1.0, %v929
    %v931 = vadd.f32 %v908, %v372
    %v933 = vrot.slane %v931, 6
    %v935 = vmul.f32 %v920, %v933
    %v936 = vadd.f32 %v379, %v935
    %v937 = vtanh.pop %v936
    %v939 = vrot.slane %v937, 1
    %v941 = vsub.f32 %v766, %v939
    %v943 = vrot.slane %v941, 7
    %v945 = vmul.f32 %v930, %v943
    %v946 = vadd.f32 %v937, %v945
    %v948 = vrot.slane %v946, 2
    %950 = vmatprep.subr.mxu0 %v381
    %951 = vmatpush1.msra.mxu0 %v380
    %952 = vmatprep.subr.mxu0 %v384
    %953 = vmatpush1.msra.mxu0 %v383
    %954 = vmatprep.subr.mxu0 %v387
    %955 = vmatpush1.msra.mxu0 %v386
    %956 = vmatprep.subr.mxu0 %v390
    %957 = vmatpush1.msra.mxu0 %v389
    %958 = vmatprep.subr.mxu0 %v393
    %959 = vmatpush1.msra.mxu0 %v392
    %960 = vmatprep.subr.mxu0 %v396
    %961 = vmatpush1.msra.mxu0 %v395
    %962 = vmatprep.subr.mxu0 %v399
    %963 = vmatpush1.msra.mxu0 %v398
    %964 = vmatprep.subr.mxu0 %v402
    %965 = vmatpush1.msra.mxu0 %v401
    %966 = vmatprep.subr.mxu0 %v405
    %967 = vmatpush1.msra.mxu0 %v404
    %968 = vmatprep.subr.mxu0 %v408
    %969 = vmatpush1.msra.mxu0 %v407
    %970 = vmatprep.subr.mxu0 %v411
    %971 = vmatpush1.msra.mxu0 %v410
    %972 = vmatprep.subr.mxu0 %v414
    %973 = vmatpush1.msra.mxu0 %v413
    %974 = vmatprep.subr.mxu0 %v417
    %975 = vmatpush1.msra.mxu0 %v416
    %976 = vmatprep.subr.mxu0 %v420
    %977 = vmatpush1.msra.mxu0 %v419
    %978 = vmatprep.subr.mxu0 %v423
    %979 = vmatpush1.msra.mxu0 %v422
    %980 = vmatprep.subr.mxu0 %v426
    %981 = vmatpush1.msra.mxu0 %v425
    %982 = vmatprep.subr.mxu0 0.0
    %983 = vmatpush1.msra.mxu0 0.0
    %984 = vmatprep.subr.mxu0 0.0
    %985 = vmatpush1.msra.mxu0 0.0
    %986 = vmatprep.subr.mxu0 0.0
    %987 = vmatpush1.msra.mxu0 0.0
    %988 = vmatprep.subr.mxu0 0.0
    %989 = vmatpush1.msra.mxu0 0.0
    %990 = vmatprep.subr.mxu0 0.0
    %991 = vmatpush1.msra.mxu0 0.0
    %992 = vmatprep.subr.mxu0 0.0
    %993 = vmatpush1.msra.mxu0 0.0
    %994 = vmatprep.subr.mxu0 0.0
    %995 = vmatpush1.msra.mxu0 0.0
    %996 = vmatprep.subr.mxu0 0.0
    %997 = vmatpush1.msra.mxu0 0.0
    %998 = vmatprep.subr.mxu0 0.0
    %999 = vmatpush1.msra.mxu0 0.0
    %1000 = vmatprep.subr.mxu0 0.0
    %1001 = vmatpush1.msra.mxu0 0.0
    %1002 = vmatprep.subr.mxu0 0.0
    %1003 = vmatpush1.msra.mxu0 0.0
    %1004 = vmatprep.subr.mxu0 0.0
    %1005 = vmatpush1.msra.mxu0 0.0
    %1006 = vmatprep.subr.mxu0 0.0
    %1007 = vmatpush1.msra.mxu0 0.0
    %1008 = vmatprep.subr.mxu0 0.0
    %1009 = vmatpush1.msra.mxu0 0.0
    %1010 = vmatprep.subr.mxu0 0.0
    %1011 = vmatpush1.msra.mxu0 0.0
    %1012 = vmatprep.subr.mxu0 0.0
    %1013 = vmatpush1.msra.mxu0 0.0
    %1014 = vmatprep.mubr.f32.mxu0 0.0
    %1015 = vmatmul.mubr.f32.gmra.mrb[0].mxu0 %v948
    %v1016 = vpop.f32.mrb[0].mxu0
    %v1017 = vadd.f32 0.0, %v1016
    %v1018 = vpop.f32.mrb[0].mxu0
    %v1019 = vadd.f32 0.0, %v1018
    %1020 = vdwg.mxu0
    %1021 = vmatprep.subr.mxu0 0.0
    %1022 = vmatpush1.msra.mxu0 %v382
    %1023 = vmatprep.subr.mxu0 0.0
    %1024 = vmatpush1.msra.mxu0 %v385
    %1025 = vmatprep.subr.mxu0 0.0
    %1026 = vmatpush1.msra.mxu0 %v388
    %1027 = vmatprep.subr.mxu0 0.0
    %1028 = vmatpush1.msra.mxu0 %v391
    %1029 = vmatprep.subr.mxu0 0.0
    %1030 = vmatpush1.msra.mxu0 %v394
    %1031 = vmatprep.subr.mxu0 0.0
    %1032 = vmatpush1.msra.mxu0 %v397
    %1033 = vmatprep.subr.mxu0 0.0
    %1034 = vmatpush1.msra.mxu0 %v400
    %1035 = vmatprep.subr.mxu0 0.0
    %1036 = vmatpush1.msra.mxu0 %v403
    %1037 = vmatprep.subr.mxu0 0.0
    %1038 = vmatpush1.msra.mxu0 %v406
    %1039 = vmatprep.subr.mxu0 0.0
    %1040 = vmatpush1.msra.mxu0 %v409
    %1041 = vmatprep.subr.mxu0 0.0
    %1042 = vmatpush1.msra.mxu0 %v412
    %1043 = vmatprep.subr.mxu0 0.0
    %1044 = vmatpush1.msra.mxu0 %v415
    %1045 = vmatprep.subr.mxu0 0.0
    %1046 = vmatpush1.msra.mxu0 %v418
    %1047 = vmatprep.subr.mxu0 0.0
    %1048 = vmatpush1.msra.mxu0 %v421
    %1049 = vmatprep.subr.mxu0 0.0
    %1050 = vmatpush1.msra.mxu0 %v424
    %1051 = vmatprep.subr.mxu0 0.0
    %1052 = vmatpush1.msra.mxu0 %v427
    %1053 = vmatprep.subr.mxu0 0.0
    %1054 = vmatpush1.msra.mxu0 0.0
    %1055 = vmatprep.subr.mxu0 0.0
    %1056 = vmatpush1.msra.mxu0 0.0
    %1057 = vmatprep.subr.mxu0 0.0
    %1058 = vmatpush1.msra.mxu0 0.0
    %1059 = vmatprep.subr.mxu0 0.0
    %1060 = vmatpush1.msra.mxu0 0.0
    %1061 = vmatprep.subr.mxu0 0.0
    %1062 = vmatpush1.msra.mxu0 0.0
    %1063 = vmatprep.subr.mxu0 0.0
    %1064 = vmatpush1.msra.mxu0 0.0
    %1065 = vmatprep.subr.mxu0 0.0
    %1066 = vmatpush1.msra.mxu0 0.0
    %1067 = vmatprep.subr.mxu0 0.0
    %1068 = vmatpush1.msra.mxu0 0.0
    %1069 = vmatprep.subr.mxu0 0.0
    %1070 = vmatpush1.msra.mxu0 0.0
    %1071 = vmatprep.subr.mxu0 0.0
    %1072 = vmatpush1.msra.mxu0 0.0
    %1073 = vmatprep.subr.mxu0 0.0
    %1074 = vmatpush1.msra.mxu0 0.0
    %1075 = vmatprep.subr.mxu0 0.0
    %1076 = vmatpush1.msra.mxu0 0.0
    %1077 = vmatprep.subr.mxu0 0.0
    %1078 = vmatpush1.msra.mxu0 0.0
    %1079 = vmatprep.subr.mxu0 0.0
    %1080 = vmatpush1.msra.mxu0 0.0
    %1081 = vmatprep.subr.mxu0 0.0
    %1082 = vmatpush1.msra.mxu0 0.0
    %1083 = vmatprep.subr.mxu0 0.0
    %1084 = vmatpush1.msra.mxu0 0.0
    %1085 = vmatprep.mubr.f32.mxu0 0.0
    %1086 = vmatmul.mubr.f32.gmra.mrb[0].mxu0 %v948
    %v1087 = vpop.f32.mrb[0].mxu0
    %v1088 = vadd.f32 0.0, %v1087
    %v1089 = vpop.f32.mrb[0].mxu0
    %1090 = vdwg.mxu0
    %v1092 = vrot.slane %v1017, 5
    %v1094 = vadd.f32 %v377, %v1092
    %v1095 = vxor.u32 %v1094, 2147483648
    %v1096 = vmul.f32 %v1095, 1.442695
    %v1097 = vpow.pop %v1096
    %v1098 = vadd.f32 %v1097, 1.0
    %v1099 = vrcp.pop %v1098
    %v1100 = vmul.f32 1.0, %v1099
    %v1102 = vrot.slane %v1019, 5
    %v1104 = vadd.f32 %v378, %v1102
    %v1105 = vxor.u32 %v1104, 2147483648
    %v1106 = vmul.f32 %v1105, 1.442695
    %v1107 = vpow.pop %v1106
    %v1108 = vadd.f32 %v1107, 1.0
    %v1109 = vrcp.pop %v1108
    %v1110 = vmul.f32 1.0, %v1109
    %v1111 = vadd.f32 %v1088, %v372
    %v1113 = vrot.slane %v1111, 5
    %v1115 = vmul.f32 %v1100, %v1113
    %v1116 = vadd.f32 %v379, %v1115
    %v1117 = vtanh.pop %v1116
    %v1119 = vrot.slane %v1117, 1
    %v1121 = vsub.f32 %v946, %v1119
    %v1123 = vrot.slane %v1121, 7
    %v1125 = vmul.f32 %v1110, %v1123
    %v1126 = vadd.f32 %v1117, %v1125
    %v1128 = vrot.slane %v1126, 3
    %1130 = vmatprep.subr.mxu0 %v381
    %1131 = vmatpush1.msra.mxu0 %v380
    %1132 = vmatprep.subr.mxu0 %v384
    %1133 = vmatpush1.msra.mxu0 %v383
    %1134 = vmatprep.subr.mxu0 %v387
    %1135 = vmatpush1.msra.mxu0 %v386
    %1136 = vmatprep.subr.mxu0 %v390
    %1137 = vmatpush1.msra.mxu0 %v389
    %1138 = vmatprep.subr.mxu0 %v393
    %1139 = vmatpush1.msra.mxu0 %v392
    %1140 = vmatprep.subr.mxu0 %v396
    %1141 = vmatpush1.msra.mxu0 %v395
    %1142 = vmatprep.subr.mxu0 %v399
    %1143 = vmatpush1.msra.mxu0 %v398
    %1144 = vmatprep.subr.mxu0 %v402
    %1145 = vmatpush1.msra.mxu0 %v401
    %1146 = vmatprep.subr.mxu0 %v405
    %1147 = vmatpush1.msra.mxu0 %v404
    %1148 = vmatprep.subr.mxu0 %v408
    %1149 = vmatpush1.msra.mxu0 %v407
    %1150 = vmatprep.subr.mxu0 %v411
    %1151 = vmatpush1.msra.mxu0 %v410
    %1152 = vmatprep.subr.mxu0 %v414
    %1153 = vmatpush1.msra.mxu0 %v413
    %1154 = vmatprep.subr.mxu0 %v417
    %1155 = vmatpush1.msra.mxu0 %v416
    %1156 = vmatprep.subr.mxu0 %v420
    %1157 = vmatpush1.msra.mxu0 %v419
    %1158 = vmatprep.subr.mxu0 %v423
    %1159 = vmatpush1.msra.mxu0 %v422
    %1160 = vmatprep.subr.mxu0 %v426
    %1161 = vmatpush1.msra.mxu0 %v425
    %1162 = vmatprep.subr.mxu0 0.0
    %1163 = vmatpush1.msra.mxu0 0.0
    %1164 = vmatprep.subr.mxu0 0.0
    %1165 = vmatpush1.msra.mxu0 0.0
    %1166 = vmatprep.subr.mxu0 0.0
    %1167 = vmatpush1.msra.mxu0 0.0
    %1168 = vmatprep.subr.mxu0 0.0
    %1169 = vmatpush1.msra.mxu0 0.0
    %1170 = vmatprep.subr.mxu0 0.0
    %1171 = vmatpush1.msra.mxu0 0.0
    %1172 = vmatprep.subr.mxu0 0.0
    %1173 = vmatpush1.msra.mxu0 0.0
    %1174 = vmatprep.subr.mxu0 0.0
    %1175 = vmatpush1.msra.mxu0 0.0
    %1176 = vmatprep.subr.mxu0 0.0
    %1177 = vmatpush1.msra.mxu0 0.0
    %1178 = vmatprep.subr.mxu0 0.0
    %1179 = vmatpush1.msra.mxu0 0.0
    %1180 = vmatprep.subr.mxu0 0.0
    %1181 = vmatpush1.msra.mxu0 0.0
    %1182 = vmatprep.subr.mxu0 0.0
    %1183 = vmatpush1.msra.mxu0 0.0
    %1184 = vmatprep.subr.mxu0 0.0
    %1185 = vmatpush1.msra.mxu0 0.0
    %1186 = vmatprep.subr.mxu0 0.0
    %1187 = vmatpush1.msra.mxu0 0.0
    %1188 = vmatprep.subr.mxu0 0.0
    %1189 = vmatpush1.msra.mxu0 0.0
    %1190 = vmatprep.subr.mxu0 0.0
    %1191 = vmatpush1.msra.mxu0 0.0
    %1192 = vmatprep.subr.mxu0 0.0
    %1193 = vmatpush1.msra.mxu0 0.0
    %1194 = vmatprep.mubr.f32.mxu0 0.0
    %1195 = vmatmul.mubr.f32.gmra.mrb[0].mxu0 %v1128
    %v1196 = vpop.f32.mrb[0].mxu0
    %v1197 = vadd.f32 0.0, %v1196
    %v1198 = vpop.f32.mrb[0].mxu0
    %v1199 = vadd.f32 0.0, %v1198
    %1200 = vdwg.mxu0
    %1201 = vmatprep.subr.mxu0 0.0
    %1202 = vmatpush1.msra.mxu0 %v382
    %1203 = vmatprep.subr.mxu0 0.0
    %1204 = vmatpush1.msra.mxu0 %v385
    %1205 = vmatprep.subr.mxu0 0.0
    %1206 = vmatpush1.msra.mxu0 %v388
    %1207 = vmatprep.subr.mxu0 0.0
    %1208 = vmatpush1.msra.mxu0 %v391
    %1209 = vmatprep.subr.mxu0 0.0
    %1210 = vmatpush1.msra.mxu0 %v394
    %1211 = vmatprep.subr.mxu0 0.0
    %1212 = vmatpush1.msra.mxu0 %v397
    %1213 = vmatprep.subr.mxu0 0.0
    %1214 = vmatpush1.msra.mxu0 %v400
    %1215 = vmatprep.subr.mxu0 0.0
    %1216 = vmatpush1.msra.mxu0 %v403
    %1217 = vmatprep.subr.mxu0 0.0
    %1218 = vmatpush1.msra.mxu0 %v406
    %1219 = vmatprep.subr.mxu0 0.0
    %1220 = vmatpush1.msra.mxu0 %v409
    %1221 = vmatprep.subr.mxu0 0.0
    %1222 = vmatpush1.msra.mxu0 %v412
    %1223 = vmatprep.subr.mxu0 0.0
    %1224 = vmatpush1.msra.mxu0 %v415
    %1225 = vmatprep.subr.mxu0 0.0
    %1226 = vmatpush1.msra.mxu0 %v418
    %1227 = vmatprep.subr.mxu0 0.0
    %1228 = vmatpush1.msra.mxu0 %v421
    %1229 = vmatprep.subr.mxu0 0.0
    %1230 = vmatpush1.msra.mxu0 %v424
    %1231 = vmatprep.subr.mxu0 0.0
    %1232 = vmatpush1.msra.mxu0 %v427
    %1233 = vmatprep.subr.mxu0 0.0
    %1234 = vmatpush1.msra.mxu0 0.0
    %1235 = vmatprep.subr.mxu0 0.0
    %1236 = vmatpush1.msra.mxu0 0.0
    %1237 = vmatprep.subr.mxu0 0.0
    %1238 = vmatpush1.msra.mxu0 0.0
    %1239 = vmatprep.subr.mxu0 0.0
    %1240 = vmatpush1.msra.mxu0 0.0
    %1241 = vmatprep.subr.mxu0 0.0
    %1242 = vmatpush1.msra.mxu0 0.0
    %1243 = vmatprep.subr.mxu0 0.0
    %1244 = vmatpush1.msra.mxu0 0.0
    %1245 = vmatprep.subr.mxu0 0.0
    %1246 = vmatpush1.msra.mxu0 0.0
    %1247 = vmatprep.subr.mxu0 0.0
    %1248 = vmatpush1.msra.mxu0 0.0
    %1249 = vmatprep.subr.mxu0 0.0
    %1250 = vmatpush1.msra.mxu0 0.0
    %1251 = vmatprep.subr.mxu0 0.0
    %1252 = vmatpush1.msra.mxu0 0.0
    %1253 = vmatprep.subr.mxu0 0.0
    %1254 = vmatpush1.msra.mxu0 0.0
    %1255 = vmatprep.subr.mxu0 0.0
    %1256 = vmatpush1.msra.mxu0 0.0
    %1257 = vmatprep.subr.mxu0 0.0
    %1258 = vmatpush1.msra.mxu0 0.0
    %1259 = vmatprep.subr.mxu0 0.0
    %1260 = vmatpush1.msra.mxu0 0.0
    %1261 = vmatprep.subr.mxu0 0.0
    %1262 = vmatpush1.msra.mxu0 0.0
    %1263 = vmatprep.subr.mxu0 0.0
    %1264 = vmatpush1.msra.mxu0 0.0
    %1265 = vmatprep.mubr.f32.mxu0 0.0
    %1266 = vmatmul.mubr.f32.gmra.mrb[0].mxu0 %v1128
    %v1267 = vpop.f32.mrb[0].mxu0
    %v1268 = vadd.f32 0.0, %v1267
    %v1269 = vpop.f32.mrb[0].mxu0
    %1270 = vdwg.mxu0
    %v1272 = vrot.slane %v1197, 4
    %v1274 = vadd.f32 %v377, %v1272
    %v1275 = vxor.u32 %v1274, 2147483648
    %v1276 = vmul.f32 %v1275, 1.442695
    %v1277 = vpow.pop %v1276
    %v1278 = vadd.f32 %v1277, 1.0
    %v1279 = vrcp.pop %v1278
    %v1280 = vmul.f32 1.0, %v1279
    %v1282 = vrot.slane %v1199, 4
    %v1284 = vadd.f32 %v378, %v1282
    %v1285 = vxor.u32 %v1284, 2147483648
    %v1286 = vmul.f32 %v1285, 1.442695
    %v1287 = vpow.pop %v1286
    %v1288 = vadd.f32 %v1287, 1.0
    %v1289 = vrcp.pop %v1288
    %v1290 = vmul.f32 1.0, %v1289
    %v1291 = vadd.f32 %v1268, %v372
    %v1293 = vrot.slane %v1291, 4
    %v1295 = vmul.f32 %v1280, %v1293
    %v1296 = vadd.f32 %v379, %v1295
    %v1297 = vtanh.pop %v1296
    %v1299 = vrot.slane %v1297, 1
    %v1301 = vsub.f32 %v1126, %v1299
    %v1303 = vrot.slane %v1301, 7
    %v1305 = vmul.f32 %v1290, %v1303
    %v1306 = vadd.f32 %v1297, %v1305
    %v1308 = vrot.slane %v1306, 4
    %1310 = vmatprep.subr.mxu0 %v381
    %1311 = vmatpush1.msra.mxu0 %v380
    %1312 = vmatprep.subr.mxu0 %v384
    %1313 = vmatpush1.msra.mxu0 %v383
    %1314 = vmatprep.subr.mxu0 %v387
    %1315 = vmatpush1.msra.mxu0 %v386
    %1316 = vmatprep.subr.mxu0 %v390
    %1317 = vmatpush1.msra.mxu0 %v389
    %1318 = vmatprep.subr.mxu0 %v393
    %1319 = vmatpush1.msra.mxu0 %v392
    %1320 = vmatprep.subr.mxu0 %v396
    %1321 = vmatpush1.msra.mxu0 %v395
    %1322 = vmatprep.subr.mxu0 %v399
    %1323 = vmatpush1.msra.mxu0 %v398
    %1324 = vmatprep.subr.mxu0 %v402
    %1325 = vmatpush1.msra.mxu0 %v401
    %1326 = vmatprep.subr.mxu0 %v405
    %1327 = vmatpush1.msra.mxu0 %v404
    %1328 = vmatprep.subr.mxu0 %v408
    %1329 = vmatpush1.msra.mxu0 %v407
    %1330 = vmatprep.subr.mxu0 %v411
    %1331 = vmatpush1.msra.mxu0 %v410
    %1332 = vmatprep.subr.mxu0 %v414
    %1333 = vmatpush1.msra.mxu0 %v413
    %1334 = vmatprep.subr.mxu0 %v417
    %1335 = vmatpush1.msra.mxu0 %v416
    %1336 = vmatprep.subr.mxu0 %v420
    %1337 = vmatpush1.msra.mxu0 %v419
    %1338 = vmatprep.subr.mxu0 %v423
    %1339 = vmatpush1.msra.mxu0 %v422
    %1340 = vmatprep.subr.mxu0 %v426
    %1341 = vmatpush1.msra.mxu0 %v425
    %1342 = vmatprep.subr.mxu0 0.0
    %1343 = vmatpush1.msra.mxu0 0.0
    %1344 = vmatprep.subr.mxu0 0.0
    %1345 = vmatpush1.msra.mxu0 0.0
    %1346 = vmatprep.subr.mxu0 0.0
    %1347 = vmatpush1.msra.mxu0 0.0
    %1348 = vmatprep.subr.mxu0 0.0
    %1349 = vmatpush1.msra.mxu0 0.0
    %1350 = vmatprep.subr.mxu0 0.0
    %1351 = vmatpush1.msra.mxu0 0.0
    %1352 = vmatprep.subr.mxu0 0.0
    %1353 = vmatpush1.msra.mxu0 0.0
    %1354 = vmatprep.subr.mxu0 0.0
    %1355 = vmatpush1.msra.mxu0 0.0
    %1356 = vmatprep.subr.mxu0 0.0
    %1357 = vmatpush1.msra.mxu0 0.0
    %1358 = vmatprep.subr.mxu0 0.0
    %1359 = vmatpush1.msra.mxu0 0.0
    %1360 = vmatprep.subr.mxu0 0.0
    %1361 = vmatpush1.msra.mxu0 0.0
    %1362 = vmatprep.subr.mxu0 0.0
    %1363 = vmatpush1.msra.mxu0 0.0
    %1364 = vmatprep.subr.mxu0 0.0
    %1365 = vmatpush1.msra.mxu0 0.0
    %1366 = vmatprep.subr.mxu0 0.0
    %1367 = vmatpush1.msra.mxu0 0.0
    %1368 = vmatprep.subr.mxu0 0.0
    %1369 = vmatpush1.msra.mxu0 0.0
    %1370 = vmatprep.subr.mxu0 0.0
    %1371 = vmatpush1.msra.mxu0 0.0
    %1372 = vmatprep.subr.mxu0 0.0
    %1373 = vmatpush1.msra.mxu0 0.0
    %1374 = vmatprep.mubr.f32.mxu0 0.0
    %1375 = vmatmul.mubr.f32.gmra.mrb[0].mxu0 %v1308
    %v1376 = vpop.f32.mrb[0].mxu0
    %v1377 = vadd.f32 0.0, %v1376
    %v1378 = vpop.f32.mrb[0].mxu0
    %v1379 = vadd.f32 0.0, %v1378
    %1380 = vdwg.mxu0
    %1381 = vmatprep.subr.mxu0 0.0
    %1382 = vmatpush1.msra.mxu0 %v382
    %1383 = vmatprep.subr.mxu0 0.0
    %1384 = vmatpush1.msra.mxu0 %v385
    %1385 = vmatprep.subr.mxu0 0.0
    %1386 = vmatpush1.msra.mxu0 %v388
    %1387 = vmatprep.subr.mxu0 0.0
    %1388 = vmatpush1.msra.mxu0 %v391
    %1389 = vmatprep.subr.mxu0 0.0
    %1390 = vmatpush1.msra.mxu0 %v394
    %1391 = vmatprep.subr.mxu0 0.0
    %1392 = vmatpush1.msra.mxu0 %v397
    %1393 = vmatprep.subr.mxu0 0.0
    %1394 = vmatpush1.msra.mxu0 %v400
    %1395 = vmatprep.subr.mxu0 0.0
    %1396 = vmatpush1.msra.mxu0 %v403
    %1397 = vmatprep.subr.mxu0 0.0
    %1398 = vmatpush1.msra.mxu0 %v406
    %1399 = vmatprep.subr.mxu0 0.0
    %1400 = vmatpush1.msra.mxu0 %v409
    %1401 = vmatprep.subr.mxu0 0.0
    %1402 = vmatpush1.msra.mxu0 %v412
    %1403 = vmatprep.subr.mxu0 0.0
    %1404 = vmatpush1.msra.mxu0 %v415
    %1405 = vmatprep.subr.mxu0 0.0
    %1406 = vmatpush1.msra.mxu0 %v418
    %1407 = vmatprep.subr.mxu0 0.0
    %1408 = vmatpush1.msra.mxu0 %v421
    %1409 = vmatprep.subr.mxu0 0.0
    %1410 = vmatpush1.msra.mxu0 %v424
    %1411 = vmatprep.subr.mxu0 0.0
    %1412 = vmatpush1.msra.mxu0 %v427
    %1413 = vmatprep.subr.mxu0 0.0
    %1414 = vmatpush1.msra.mxu0 0.0
    %1415 = vmatprep.subr.mxu0 0.0
    %1416 = vmatpush1.msra.mxu0 0.0
    %1417 = vmatprep.subr.mxu0 0.0
    %1418 = vmatpush1.msra.mxu0 0.0
    %1419 = vmatprep.subr.mxu0 0.0
    %1420 = vmatpush1.msra.mxu0 0.0
    %1421 = vmatprep.subr.mxu0 0.0
    %1422 = vmatpush1.msra.mxu0 0.0
    %1423 = vmatprep.subr.mxu0 0.0
    %1424 = vmatpush1.msra.mxu0 0.0
    %1425 = vmatprep.subr.mxu0 0.0
    %1426 = vmatpush1.msra.mxu0 0.0
    %1427 = vmatprep.subr.mxu0 0.0
    %1428 = vmatpush1.msra.mxu0 0.0
    %1429 = vmatprep.subr.mxu0 0.0
    %1430 = vmatpush1.msra.mxu0 0.0
    %1431 = vmatprep.subr.mxu0 0.0
    %1432 = vmatpush1.msra.mxu0 0.0
    %1433 = vmatprep.subr.mxu0 0.0
    %1434 = vmatpush1.msra.mxu0 0.0
    %1435 = vmatprep.subr.mxu0 0.0
    %1436 = vmatpush1.msra.mxu0 0.0
    %1437 = vmatprep.subr.mxu0 0.0
    %1438 = vmatpush1.msra.mxu0 0.0
    %1439 = vmatprep.subr.mxu0 0.0
    %1440 = vmatpush1.msra.mxu0 0.0
    %1441 = vmatprep.subr.mxu0 0.0
    %1442 = vmatpush1.msra.mxu0 0.0
    %1443 = vmatprep.subr.mxu0 0.0
    %1444 = vmatpush1.msra.mxu0 0.0
    %1445 = vmatprep.mubr.f32.mxu0 0.0
    %1446 = vmatmul.mubr.f32.gmra.mrb[0].mxu0 %v1308
    %v1447 = vpop.f32.mrb[0].mxu0
    %v1448 = vadd.f32 0.0, %v1447
    %v1449 = vpop.f32.mrb[0].mxu0
    %1450 = vdwg.mxu0
    %v1452 = vrot.slane %v1377, 3
    %v1454 = vadd.f32 %v377, %v1452
    %v1455 = vxor.u32 %v1454, 2147483648
    %v1456 = vmul.f32 %v1455, 1.442695
    %v1457 = vpow.pop %v1456
    %v1458 = vadd.f32 %v1457, 1.0
    %v1459 = vrcp.pop %v1458
    %v1460 = vmul.f32 1.0, %v1459
    %v1462 = vrot.slane %v1379, 3
    %v1464 = vadd.f32 %v378, %v1462
    %v1465 = vxor.u32 %v1464, 2147483648
    %v1466 = vmul.f32 %v1465, 1.442695
    %v1467 = vpow.pop %v1466
    %v1468 = vadd.f32 %v1467, 1.0
    %v1469 = vrcp.pop %v1468
    %v1470 = vmul.f32 1.0, %v1469
    %v1471 = vadd.f32 %v1448, %v372
    %v1473 = vrot.slane %v1471, 3
    %v1475 = vmul.f32 %v1460, %v1473
    %v1476 = vadd.f32 %v379, %v1475
    %v1477 = vtanh.pop %v1476
    %v1479 = vrot.slane %v1477, 1
    %v1481 = vsub.f32 %v1306, %v1479
    %v1483 = vrot.slane %v1481, 7
    %v1485 = vmul.f32 %v1470, %v1483
    %v1486 = vadd.f32 %v1477, %v1485
    %v1488 = vrot.slane %v1486, 5
    %1490 = vmatprep.subr.mxu0 %v381
    %1491 = vmatpush1.msra.mxu0 %v380
    %1492 = vmatprep.subr.mxu0 %v384
    %1493 = vmatpush1.msra.mxu0 %v383
    %1494 = vmatprep.subr.mxu0 %v387
    %1495 = vmatpush1.msra.mxu0 %v386
    %1496 = vmatprep.subr.mxu0 %v390
    %1497 = vmatpush1.msra.mxu0 %v389
    %1498 = vmatprep.subr.mxu0 %v393
    %1499 = vmatpush1.msra.mxu0 %v392
    %1500 = vmatprep.subr.mxu0 %v396
    %1501 = vmatpush1.msra.mxu0 %v395
    %1502 = vmatprep.subr.mxu0 %v399
    %1503 = vmatpush1.msra.mxu0 %v398
    %1504 = vmatprep.subr.mxu0 %v402
    %1505 = vmatpush1.msra.mxu0 %v401
    %1506 = vmatprep.subr.mxu0 %v405
    %1507 = vmatpush1.msra.mxu0 %v404
    %1508 = vmatprep.subr.mxu0 %v408
    %1509 = vmatpush1.msra.mxu0 %v407
    %1510 = vmatprep.subr.mxu0 %v411
    %1511 = vmatpush1.msra.mxu0 %v410
    %1512 = vmatprep.subr.mxu0 %v414
    %1513 = vmatpush1.msra.mxu0 %v413
    %1514 = vmatprep.subr.mxu0 %v417
    %1515 = vmatpush1.msra.mxu0 %v416
    %1516 = vmatprep.subr.mxu0 %v420
    %1517 = vmatpush1.msra.mxu0 %v419
    %1518 = vmatprep.subr.mxu0 %v423
    %1519 = vmatpush1.msra.mxu0 %v422
    %1520 = vmatprep.subr.mxu0 %v426
    %1521 = vmatpush1.msra.mxu0 %v425
    %1522 = vmatprep.subr.mxu0 0.0
    %1523 = vmatpush1.msra.mxu0 0.0
    %1524 = vmatprep.subr.mxu0 0.0
    %1525 = vmatpush1.msra.mxu0 0.0
    %1526 = vmatprep.subr.mxu0 0.0
    %1527 = vmatpush1.msra.mxu0 0.0
    %1528 = vmatprep.subr.mxu0 0.0
    %1529 = vmatpush1.msra.mxu0 0.0
    %1530 = vmatprep.subr.mxu0 0.0
    %1531 = vmatpush1.msra.mxu0 0.0
    %1532 = vmatprep.subr.mxu0 0.0
    %1533 = vmatpush1.msra.mxu0 0.0
    %1534 = vmatprep.subr.mxu0 0.0
    %1535 = vmatpush1.msra.mxu0 0.0
    %1536 = vmatprep.subr.mxu0 0.0
    %1537 = vmatpush1.msra.mxu0 0.0
    %1538 = vmatprep.subr.mxu0 0.0
    %1539 = vmatpush1.msra.mxu0 0.0
    %1540 = vmatprep.subr.mxu0 0.0
    %1541 = vmatpush1.msra.mxu0 0.0
    %1542 = vmatprep.subr.mxu0 0.0
    %1543 = vmatpush1.msra.mxu0 0.0
    %1544 = vmatprep.subr.mxu0 0.0
    %1545 = vmatpush1.msra.mxu0 0.0
    %1546 = vmatprep.subr.mxu0 0.0
    %1547 = vmatpush1.msra.mxu0 0.0
    %1548 = vmatprep.subr.mxu0 0.0
    %1549 = vmatpush1.msra.mxu0 0.0
    %1550 = vmatprep.subr.mxu0 0.0
    %1551 = vmatpush1.msra.mxu0 0.0
    %1552 = vmatprep.subr.mxu0 0.0
    %1553 = vmatpush1.msra.mxu0 0.0
    %1554 = vmatprep.mubr.f32.mxu0 0.0
    %1555 = vmatmul.mubr.f32.gmra.mrb[0].mxu0 %v1488
    %v1556 = vpop.f32.mrb[0].mxu0
    %v1557 = vadd.f32 0.0, %v1556
    %v1558 = vpop.f32.mrb[0].mxu0
    %v1559 = vadd.f32 0.0, %v1558
    %1560 = vdwg.mxu0
    %1561 = vmatprep.subr.mxu0 0.0
    %1562 = vmatpush1.msra.mxu0 %v382
    %1563 = vmatprep.subr.mxu0 0.0
    %1564 = vmatpush1.msra.mxu0 %v385
    %1565 = vmatprep.subr.mxu0 0.0
    %1566 = vmatpush1.msra.mxu0 %v388
    %1567 = vmatprep.subr.mxu0 0.0
    %1568 = vmatpush1.msra.mxu0 %v391
    %1569 = vmatprep.subr.mxu0 0.0
    %1570 = vmatpush1.msra.mxu0 %v394
    %1571 = vmatprep.subr.mxu0 0.0
    %1572 = vmatpush1.msra.mxu0 %v397
    %1573 = vmatprep.subr.mxu0 0.0
    %1574 = vmatpush1.msra.mxu0 %v400
    %1575 = vmatprep.subr.mxu0 0.0
    %1576 = vmatpush1.msra.mxu0 %v403
    %1577 = vmatprep.subr.mxu0 0.0
    %1578 = vmatpush1.msra.mxu0 %v406
    %1579 = vmatprep.subr.mxu0 0.0
    %1580 = vmatpush1.msra.mxu0 %v409
    %1581 = vmatprep.subr.mxu0 0.0
    %1582 = vmatpush1.msra.mxu0 %v412
    %1583 = vmatprep.subr.mxu0 0.0
    %1584 = vmatpush1.msra.mxu0 %v415
    %1585 = vmatprep.subr.mxu0 0.0
    %1586 = vmatpush1.msra.mxu0 %v418
    %1587 = vmatprep.subr.mxu0 0.0
    %1588 = vmatpush1.msra.mxu0 %v421
    %1589 = vmatprep.subr.mxu0 0.0
    %1590 = vmatpush1.msra.mxu0 %v424
    %1591 = vmatprep.subr.mxu0 0.0
    %1592 = vmatpush1.msra.mxu0 %v427
    %1593 = vmatprep.subr.mxu0 0.0
    %1594 = vmatpush1.msra.mxu0 0.0
    %1595 = vmatprep.subr.mxu0 0.0
    %1596 = vmatpush1.msra.mxu0 0.0
    %1597 = vmatprep.subr.mxu0 0.0
    %1598 = vmatpush1.msra.mxu0 0.0
    %1599 = vmatprep.subr.mxu0 0.0
    %1600 = vmatpush1.msra.mxu0 0.0
    %1601 = vmatprep.subr.mxu0 0.0
    %1602 = vmatpush1.msra.mxu0 0.0
    %1603 = vmatprep.subr.mxu0 0.0
    %1604 = vmatpush1.msra.mxu0 0.0
    %1605 = vmatprep.subr.mxu0 0.0
    %1606 = vmatpush1.msra.mxu0 0.0
    %1607 = vmatprep.subr.mxu0 0.0
    %1608 = vmatpush1.msra.mxu0 0.0
    %1609 = vmatprep.subr.mxu0 0.0
    %1610 = vmatpush1.msra.mxu0 0.0
    %1611 = vmatprep.subr.mxu0 0.0
    %1612 = vmatpush1.msra.mxu0 0.0
    %1613 = vmatprep.subr.mxu0 0.0
    %1614 = vmatpush1.msra.mxu0 0.0
    %1615 = vmatprep.subr.mxu0 0.0
    %1616 = vmatpush1.msra.mxu0 0.0
    %1617 = vmatprep.subr.mxu0 0.0
    %1618 = vmatpush1.msra.mxu0 0.0
    %1619 = vmatprep.subr.mxu0 0.0
    %1620 = vmatpush1.msra.mxu0 0.0
    %1621 = vmatprep.subr.mxu0 0.0
    %1622 = vmatpush1.msra.mxu0 0.0
    %1623 = vmatprep.subr.mxu0 0.0
    %1624 = vmatpush1.msra.mxu0 0.0
    %1625 = vmatprep.mubr.f32.mxu0 0.0
    %1626 = vmatmul.mubr.f32.gmra.mrb[0].mxu0 %v1488
    %v1627 = vpop.f32.mrb[0].mxu0
    %v1628 = vadd.f32 0.0, %v1627
    %v1629 = vpop.f32.mrb[0].mxu0
    %1630 = vdwg.mxu0
    %v1632 = vrot.slane %v1557, 2
    %v1634 = vadd.f32 %v377, %v1632
    %v1635 = vxor.u32 %v1634, 2147483648
    %v1636 = vmul.f32 %v1635, 1.442695
    %v1637 = vpow.pop %v1636
    %v1638 = vadd.f32 %v1637, 1.0
    %v1639 = vrcp.pop %v1638
    %v1640 = vmul.f32 1.0, %v1639
    %v1642 = vrot.slane %v1559, 2
    %v1644 = vadd.f32 %v378, %v1642
    %v1645 = vxor.u32 %v1644, 2147483648
    %v1646 = vmul.f32 %v1645, 1.442695
    %v1647 = vpow.pop %v1646
    %v1648 = vadd.f32 %v1647, 1.0
    %v1649 = vrcp.pop %v1648
    %v1650 = vmul.f32 1.0, %v1649
    %v1651 = vadd.f32 %v1628, %v372
    %v1653 = vrot.slane %v1651, 2
    %v1655 = vmul.f32 %v1640, %v1653
    %v1656 = vadd.f32 %v379, %v1655
    %v1657 = vtanh.pop %v1656
    %v1659 = vrot.slane %v1657, 1
    %v1661 = vsub.f32 %v1486, %v1659
    %v1663 = vrot.slane %v1661, 7
    %v1665 = vmul.f32 %v1650, %v1663
    %v1666 = vadd.f32 %v1657, %v1665
    %v1668 = vrot.slane %v1666, 6
    %1670 = vmatprep.subr.mxu0 %v381
    %1671 = vmatpush1.msra.mxu0 %v380
    %1672 = vmatprep.subr.mxu0 %v384
    %1673 = vmatpush1.msra.mxu0 %v383
    %1674 = vmatprep.subr.mxu0 %v387
    %1675 = vmatpush1.msra.mxu0 %v386
    %1676 = vmatprep.subr.mxu0 %v390
    %1677 = vmatpush1.msra.mxu0 %v389
    %1678 = vmatprep.subr.mxu0 %v393
    %1679 = vmatpush1.msra.mxu0 %v392
    %1680 = vmatprep.subr.mxu0 %v396
    %1681 = vmatpush1.msra.mxu0 %v395
    %1682 = vmatprep.subr.mxu0 %v399
    %1683 = vmatpush1.msra.mxu0 %v398
    %1684 = vmatprep.subr.mxu0 %v402
    %1685 = vmatpush1.msra.mxu0 %v401
    %1686 = vmatprep.subr.mxu0 %v405
    %1687 = vmatpush1.msra.mxu0 %v404
    %1688 = vmatprep.subr.mxu0 %v408
    %1689 = vmatpush1.msra.mxu0 %v407
    %1690 = vmatprep.subr.mxu0 %v411
    %1691 = vmatpush1.msra.mxu0 %v410
    %1692 = vmatprep.subr.mxu0 %v414
    %1693 = vmatpush1.msra.mxu0 %v413
    %1694 = vmatprep.subr.mxu0 %v417
    %1695 = vmatpush1.msra.mxu0 %v416
    %1696 = vmatprep.subr.mxu0 %v420
    %1697 = vmatpush1.msra.mxu0 %v419
    %1698 = vmatprep.subr.mxu0 %v423
    %1699 = vmatpush1.msra.mxu0 %v422
    %1700 = vmatprep.subr.mxu0 %v426
    %1701 = vmatpush1.msra.mxu0 %v425
    %1702 = vmatprep.subr.mxu0 0.0
    %1703 = vmatpush1.msra.mxu0 0.0
    %1704 = vmatprep.subr.mxu0 0.0
    %1705 = vmatpush1.msra.mxu0 0.0
    %1706 = vmatprep.subr.mxu0 0.0
    %1707 = vmatpush1.msra.mxu0 0.0
    %1708 = vmatprep.subr.mxu0 0.0
    %1709 = vmatpush1.msra.mxu0 0.0
    %1710 = vmatprep.subr.mxu0 0.0
    %1711 = vmatpush1.msra.mxu0 0.0
    %1712 = vmatprep.subr.mxu0 0.0
    %1713 = vmatpush1.msra.mxu0 0.0
    %1714 = vmatprep.subr.mxu0 0.0
    %1715 = vmatpush1.msra.mxu0 0.0
    %1716 = vmatprep.subr.mxu0 0.0
    %1717 = vmatpush1.msra.mxu0 0.0
    %1718 = vmatprep.subr.mxu0 0.0
    %1719 = vmatpush1.msra.mxu0 0.0
    %1720 = vmatprep.subr.mxu0 0.0
    %1721 = vmatpush1.msra.mxu0 0.0
    %1722 = vmatprep.subr.mxu0 0.0
    %1723 = vmatpush1.msra.mxu0 0.0
    %1724 = vmatprep.subr.mxu0 0.0
    %1725 = vmatpush1.msra.mxu0 0.0
    %1726 = vmatprep.subr.mxu0 0.0
    %1727 = vmatpush1.msra.mxu0 0.0
    %1728 = vmatprep.subr.mxu0 0.0
    %1729 = vmatpush1.msra.mxu0 0.0
    %1730 = vmatprep.subr.mxu0 0.0
    %1731 = vmatpush1.msra.mxu0 0.0
    %1732 = vmatprep.subr.mxu0 0.0
    %1733 = vmatpush1.msra.mxu0 0.0
    %1734 = vmatprep.mubr.f32.mxu0 0.0
    %1735 = vmatmul.mubr.f32.gmra.mrb[0].mxu0 %v1668
    %v1736 = vpop.f32.mrb[0].mxu0
    %v1737 = vadd.f32 0.0, %v1736
    %v1738 = vpop.f32.mrb[0].mxu0
    %v1739 = vadd.f32 0.0, %v1738
    %1740 = vdwg.mxu0
    %1741 = vmatprep.subr.mxu0 0.0
    %1742 = vmatpush1.msra.mxu0 %v382
    %1743 = vmatprep.subr.mxu0 0.0
    %1744 = vmatpush1.msra.mxu0 %v385
    %1745 = vmatprep.subr.mxu0 0.0
    %1746 = vmatpush1.msra.mxu0 %v388
    %1747 = vmatprep.subr.mxu0 0.0
    %1748 = vmatpush1.msra.mxu0 %v391
    %1749 = vmatprep.subr.mxu0 0.0
    %1750 = vmatpush1.msra.mxu0 %v394
    %1751 = vmatprep.subr.mxu0 0.0
    %1752 = vmatpush1.msra.mxu0 %v397
    %1753 = vmatprep.subr.mxu0 0.0
    %1754 = vmatpush1.msra.mxu0 %v400
    %1755 = vmatprep.subr.mxu0 0.0
    %1756 = vmatpush1.msra.mxu0 %v403
    %1757 = vmatprep.subr.mxu0 0.0
    %1758 = vmatpush1.msra.mxu0 %v406
    %1759 = vmatprep.subr.mxu0 0.0
    %1760 = vmatpush1.msra.mxu0 %v409
    %1761 = vmatprep.subr.mxu0 0.0
    %1762 = vmatpush1.msra.mxu0 %v412
    %1763 = vmatprep.subr.mxu0 0.0
    %1764 = vmatpush1.msra.mxu0 %v415
    %1765 = vmatprep.subr.mxu0 0.0
    %1766 = vmatpush1.msra.mxu0 %v418
    %1767 = vmatprep.subr.mxu0 0.0
    %1768 = vmatpush1.msra.mxu0 %v421
    %1769 = vmatprep.subr.mxu0 0.0
    %1770 = vmatpush1.msra.mxu0 %v424
    %1771 = vmatprep.subr.mxu0 0.0
    %1772 = vmatpush1.msra.mxu0 %v427
    %1773 = vmatprep.subr.mxu0 0.0
    %1774 = vmatpush1.msra.mxu0 0.0
    %1775 = vmatprep.subr.mxu0 0.0
    %1776 = vmatpush1.msra.mxu0 0.0
    %1777 = vmatprep.subr.mxu0 0.0
    %1778 = vmatpush1.msra.mxu0 0.0
    %1779 = vmatprep.subr.mxu0 0.0
    %1780 = vmatpush1.msra.mxu0 0.0
    %1781 = vmatprep.subr.mxu0 0.0
    %1782 = vmatpush1.msra.mxu0 0.0
    %1783 = vmatprep.subr.mxu0 0.0
    %1784 = vmatpush1.msra.mxu0 0.0
    %1785 = vmatprep.subr.mxu0 0.0
    %1786 = vmatpush1.msra.mxu0 0.0
    %1787 = vmatprep.subr.mxu0 0.0
    %1788 = vmatpush1.msra.mxu0 0.0
    %1789 = vmatprep.subr.mxu0 0.0
    %1790 = vmatpush1.msra.mxu0 0.0
    %1791 = vmatprep.subr.mxu0 0.0
    %1792 = vmatpush1.msra.mxu0 0.0
    %1793 = vmatprep.subr.mxu0 0.0
    %1794 = vmatpush1.msra.mxu0 0.0
    %1795 = vmatprep.subr.mxu0 0.0
    %1796 = vmatpush1.msra.mxu0 0.0
    %1797 = vmatprep.subr.mxu0 0.0
    %1798 = vmatpush1.msra.mxu0 0.0
    %1799 = vmatprep.subr.mxu0 0.0
    %1800 = vmatpush1.msra.mxu0 0.0
    %1801 = vmatprep.subr.mxu0 0.0
    %1802 = vmatpush1.msra.mxu0 0.0
    %1803 = vmatprep.subr.mxu0 0.0
    %1804 = vmatpush1.msra.mxu0 0.0
    %1805 = vmatprep.mubr.f32.mxu0 0.0
    %1806 = vmatmul.mubr.f32.gmra.mrb[0].mxu0 %v1668
    %v1807 = vpop.f32.mrb[0].mxu0
    %v1808 = vadd.f32 0.0, %v1807
    %v1809 = vpop.f32.mrb[0].mxu0
    %1810 = vdwg.mxu0
    %v1812 = vrot.slane %v1737, 1
    %v1814 = vadd.f32 %v377, %v1812
    %v1815 = vxor.u32 %v1814, 2147483648
    %v1816 = vmul.f32 %v1815, 1.442695
    %v1817 = vpow.pop %v1816
    %v1818 = vadd.f32 %v1817, 1.0
    %v1819 = vrcp.pop %v1818
    %v1820 = vmul.f32 1.0, %v1819
    %v1822 = vrot.slane %v1739, 1
    %v1824 = vadd.f32 %v378, %v1822
    %v1825 = vxor.u32 %v1824, 2147483648
    %v1826 = vmul.f32 %v1825, 1.442695
    %v1827 = vpow.pop %v1826
    %v1828 = vadd.f32 %v1827, 1.0
    %v1829 = vrcp.pop %v1828
    %v1830 = vmul.f32 1.0, %v1829
    %v1831 = vadd.f32 %v1808, %v372
    %v1833 = vrot.slane %v1831, 1
    %v1835 = vmul.f32 %v1820, %v1833
    %v1836 = vadd.f32 %v379, %v1835
    %v1837 = vtanh.pop %v1836
    %v1839 = vrot.slane %v1837, 1
    %v1841 = vsub.f32 %v1666, %v1839
    %v1843 = vrot.slane %v1841, 7
    %v1845 = vmul.f32 %v1830, %v1843
    %v1846 = vadd.f32 %v1837, %v1845
    %vm1847 = vcmask 1040384
    %v1848 = vsel %vm1847, %v589, %v766
    %vm1849 = vcmask 1041408
    %v1850 = vsel %vm1849, %v1848, %v946
    %vm1851 = vcmask 1042432
    %v1852 = vsel %vm1851, %v1850, %v1126
    %vm1853 = vcmask 1043456
    %v1854 = vsel %vm1853, %v1852, %v1306
    %vm1855 = vcmask 1044480
    %v1856 = vsel %vm1855, %v1854, %v1486
    %vm1857 = vcmask 1045504
    %v1858 = vsel %vm1857, %v1856, %v1666
    %vm1859 = vcmask 1046528
    %v1860 = vsel %vm1859, %v1858, %v1846
    %1861 = vst [vmem:[#allocation9] sm:$0xff] %v1860
    // Predicated region
    $region42: #{tpu_custom_call.1} parent=1 // pred_check
      _
    $region43: #{tpu_custom_call.1} parent=1 // pred_check_branch
      %1863 = sbr.rel (0) target = $region45
    $region44: #{tpu_custom_call.1} parent=1 // pred_region
      %s1865 = ssub.s32 128, 128
      %1866 = vsyncadd [#allocation5], %s1865
      %s1868 = sshll.u32 [#allocation9], 4
      %s1869 = int_to_ptr.vmem [resolvable:$true] %s1868
      %1871 = dma.vmem_to_hbm [thread:$0]  %s1869, 128, %s7, [#allocation5]
    $region45: #{tpu_custom_call.1} parent=1 // pred_fallthru
      _
    // Predicated region
    $region46: #{tpu_custom_call.1} parent=1 // pred_check
      _
    $region47: #{tpu_custom_call.1} parent=1 // pred_check_branch
      %1873 = sbr.rel (0) target = $region49
    $region48: #{tpu_custom_call.1} parent=1 // pred_region
      %1874 = dma.done [#allocation5], 128
    $region49: #{tpu_custom_call.1} parent=1 // pred_fallthru
      _
    %1875 = vsyncpa [#allocation4], 1
    %1876 = vsyncpa [#allocation7], 1
    %1877 = vsyncpa [#allocation5], 1

</llo_original>
